<compile_context>
chip_gen: v7x
topology: tpu7x:2x2x1
jax: 0.10.0
libtpu: 0.0.40
codegen_flags: <defaults>
</compile_context>

<pallas_src>
import functools

import jax
import jax.numpy as jnp
from jax import lax
from jax.experimental import pallas as pl
from jax.experimental.pallas import tpu as pltpu


def moe_kernel(x_ref, wgT_ref, bg_ref, w1_ref, b1_ref, w2_ref, b2_ref,
               o_ref, gw_sc, xc_sc, acc_sc, *, num_experts, compute_dtype):
    e = pl.program_id(1)

    @pl.when(e == 0)
    def _init():
        # ---- fused gating: gate linear + softmax + top-2 -> dense weights ----
        x = x_ref[...]                                               # (TM, D) f32
        logits = jnp.dot(x, wgT_ref[...],
                         preferred_element_type=jnp.float32) + bg_ref[...]
        m = jnp.max(logits, axis=-1, keepdims=True)
        p = jnp.exp(logits - m)
        scores = p / jnp.sum(p, axis=-1, keepdims=True)              # (TM, E)
        # top-2 selection (lowest-index tie-break) on the VPU/XLU.
        eidx = lax.broadcasted_iota(jnp.int32, scores.shape, 1)
        big = jnp.int32(num_experts)
        m1 = jnp.max(scores, axis=-1, keepdims=True)
        i1 = jnp.min(jnp.where(scores == m1, eidx, big), axis=-1, keepdims=True)
        masked = jnp.where(eidx == i1, -jnp.inf, scores)
        m2 = jnp.max(masked, axis=-1, keepdims=True)
        i2 = jnp.min(jnp.where(masked == m2, eidx, big), axis=-1, keepdims=True)
        keep = (eidx == i1) | (eidx == i2)
        gw_sc[...] = jnp.where(keep, scores, 0.0)
        # cache bf16 activations once (reused for every expert matmul).
        xc_sc[...] = x.astype(compute_dtype)
        acc_sc[...] = jnp.zeros_like(acc_sc)

    # ---- one expert's FFN on this token tile (weights streamed per e) ----
    xc = xc_sc[...]                                                  # (TM, D) bf16
    w1 = w1_ref[0]                                                   # (D, F)
    w2 = w2_ref[0]                                                   # (F, D)
    h = jnp.dot(xc, w1, preferred_element_type=jnp.float32) + b1_ref[0]
    h = jnp.maximum(h, 0.0)            # ReLU (dropout is identity in eval mode)
    y = jnp.dot(h.astype(compute_dtype), w2,
                preferred_element_type=jnp.float32) + b2_ref[0]      # (TM, D)

    # select this expert's gating column (avoids dynamic lane slicing).
    eidx2 = lax.broadcasted_iota(jnp.int32, gw_sc.shape, 1)
    gw_e = jnp.sum(jnp.where(eidx2 == e, gw_sc[...], 0.0),
                   axis=-1, keepdims=True)                           # (TM, 1)
    acc_sc[...] += gw_e * y

    @pl.when(e == num_experts - 1)
    def _finalize():
        o_ref[...] = acc_sc[...].astype(o_ref.dtype)


def moe_feedforward_top2(x, params, *, tile_m=128, weight_dtype=jnp.bfloat16,
                         vmem_limit_bytes=64 * 1024 * 1024):
    """x: [B, T, d_model] float32 -> [B, T, d_model]."""
    B, T, D = x.shape
    E, _, F_ = params["w1"].shape
    N = B * T
    xf = x.reshape(N, D)

    # pad token count to a multiple of the tile (padded rows sliced off below).
    Np = pl.cdiv(N, tile_m) * tile_m
    if Np != N:
        xf = jnp.pad(xf, ((0, Np - N), (0, 0)))

    # Gate path stays f32 (top-2 selection is precision-sensitive);
    # expert matmul weights are cast to bf16, accumulation stays f32.
    wgT = params["wg"].T.astype(jnp.float32)                  # (D, E)
    bg = params["bg"].reshape(1, E).astype(jnp.float32)       # (1, E)
    w1 = params["w1"].astype(weight_dtype)                    # (E, D, F)
    b1 = params["b1"].reshape(E, 1, F_).astype(jnp.float32)   # (E, 1, F)
    w2 = params["w2"].astype(weight_dtype)                    # (E, F, D)
    b2 = params["b2"].reshape(E, 1, D).astype(jnp.float32)    # (E, 1, D)

    # NOTE: keep D and F multiples of 128 for lane-dense (unmasked) stores.
    kernel = functools.partial(moe_kernel, num_experts=E,
                               compute_dtype=weight_dtype)
    out = pl.pallas_call(
        kernel,
        out_shape=jax.ShapeDtypeStruct((Np, D), x.dtype),
        grid_spec=pltpu.PrefetchScalarGridSpec(
            num_scalar_prefetch=0,
            grid=(Np // tile_m, E),
            in_specs=[
                pl.BlockSpec((tile_m, D), lambda i, e: (i, 0)),     # x tile (resident over e)
                pl.BlockSpec((D, E), lambda i, e: (0, 0)),          # gate W^T
                pl.BlockSpec((1, E), lambda i, e: (0, 0)),          # gate b
                pl.BlockSpec((1, D, F_), lambda i, e: (e, 0, 0)),   # W1[e] streamed
                pl.BlockSpec((1, 1, F_), lambda i, e: (e, 0, 0)),   # b1[e]
                pl.BlockSpec((1, F_, D), lambda i, e: (e, 0, 0)),   # W2[e] streamed
                pl.BlockSpec((1, 1, D), lambda i, e: (e, 0, 0)),    # b2[e]
            ],
            out_specs=pl.BlockSpec((tile_m, D), lambda i, e: (i, 0)),
            scratch_shapes=[
                pltpu.VMEM((tile_m, E), jnp.float32),     # dense top-2 gating weights
                pltpu.VMEM((tile_m, D), weight_dtype),    # cached bf16 activations
                pltpu.VMEM((tile_m, D), jnp.float32),     # f32 output accumulator
            ],
        ),
        compiler_params=pltpu.CompilerParams(
            dimension_semantics=("parallel", "arbitrary"),
            vmem_limit_bytes=vmem_limit_bytes,
        ),
    )(xf, wgT, bg, w1, b1, w2, b2)

    return out[:N].reshape(B, T, D)


def moe_reference(x, params):
    """Pure-JAX f32 reference (dense equivalent of the PyTorch masked loop)."""
    B, T, D = x.shape
    E = params["w1"].shape[0]
    xf = x.reshape(-1, D)
    logits = xf @ params["wg"].T + params["bg"]
    scores = jax.nn.softmax(logits, axis=-1)
    vals, idx = jax.lax.top_k(scores, 2)
    gw = (jax.nn.one_hot(idx[:, 0], E, dtype=xf.dtype) * vals[:, 0:1]
          + jax.nn.one_hot(idx[:, 1], E, dtype=xf.dtype) * vals[:, 1:2])
    out = jnp.zeros_like(xf)
    for e in range(E):
        h = jnp.maximum(xf @ params["w1"][e] + params["b1"][e], 0.0)
        y = h @ params["w2"][e] + params["b2"][e]
        out = out + gw[:, e:e + 1] * y
    return out.reshape(B, T, D)


def init_params(key, d_model, d_ff, num_experts):
    ks = jax.random.split(key, 6)
    s = 0.05
    return {
        "wg": jax.random.normal(ks[0], (num_experts, d_model), jnp.float32) * s,
        "bg": jax.random.normal(ks[1], (num_experts,), jnp.float32) * s,
        "w1": jax.random.normal(ks[2], (num_experts, d_model, d_ff), jnp.float32) * s,
        "b1": jax.random.normal(ks[3], (num_experts, d_ff), jnp.float32) * s,
        "w2": jax.random.normal(ks[4], (num_experts, d_ff, d_model), jnp.float32) * s,
        "b2": jax.random.normal(ks[5], (num_experts, d_model), jnp.float32) * s,
    }


if __name__ == "__main__":
    # TODO(synk): gating noise + dropout are training-only (identity in eval); not modeled.
    # d_model / d_ff chosen as multiples of 128 so loads/stores are lane-dense.
    B, T, d_model, d_ff, num_experts = 2, 8, 128, 256, 4
    key = jax.random.PRNGKey(0)
    k_x, k_p = jax.random.split(key)
    x = jax.random.normal(k_x, (B, T, d_model), jnp.float32)
    params = init_params(k_p, d_model, d_ff, num_experts)

    out = moe_feedforward_top2(x, params, tile_m=128)
    out = jax.block_until_ready(out)

    ref = moe_reference(x, params)
    assert out.shape == (B, T, d_model)
    # tolerance loosened for bf16 expert weights (f32 accumulation).
    assert jnp.allclose(out, ref, atol=1e-2, rtol=5e-2), "mismatch vs reference"
    print("KERNEL_OK")
</pallas_src>

<mosaic_0001>
module attributes {stable_mosaic.version = 11 : i64} {
  func.func @moe_kernel(%arg0: i32, %arg1: i32, %arg2: memref<128x128xf32, #tpu.memory_space<vmem>>, %arg3: memref<128x4xf32, #tpu.memory_space<vmem>>, %arg4: memref<1x4xf32, #tpu.memory_space<vmem>>, %arg5: memref<1x128x256xbf16, #tpu.memory_space<vmem>>, %arg6: memref<1x1x256xf32, #tpu.memory_space<vmem>>, %arg7: memref<1x256x128xbf16, #tpu.memory_space<vmem>>, %arg8: memref<1x1x128xf32, #tpu.memory_space<vmem>>, %arg9: memref<128x128xf32, #tpu.memory_space<vmem>>, %arg10: memref<128x4xf32, #tpu.memory_space<vmem>>, %arg11: memref<128x128xbf16, #tpu.memory_space<vmem>>, %arg12: memref<128x128xf32, #tpu.memory_space<vmem>>) attributes {dimension_semantics = [#tpu.dimension_semantics<parallel>, #tpu.dimension_semantics<arbitrary>], iteration_bounds = array<i64: 1, 4>, scalar_prefetch = 0 : i64, scratch_operands = 3 : i64, tpu.core_type = #tpu.core_type<tc>, window_params = [{transform_indices = @transform_0, window_bounds = array<i64: 128, 128>}, {pipeline_mode = #tpu.pipeline_mode<synchronous>, transform_indices = @transform_1, window_bounds = array<i64: 128, 4>}, {pipeline_mode = #tpu.pipeline_mode<synchronous>, transform_indices = @transform_2, window_bounds = array<i64: 1, 4>}, {transform_indices = @transform_3, window_bounds = array<i64: 1, 128, 256>}, {transform_indices = @transform_4, window_bounds = array<i64: 1, 1, 256>}, {transform_indices = @transform_5, window_bounds = array<i64: 1, 256, 128>}, {transform_indices = @transform_6, window_bounds = array<i64: 1, 1, 128>}, {transform_indices = @transform_7, window_bounds = array<i64: 128, 128>}]} {
    %c0_i32 = arith.constant 0 : i32
    %0 = arith.cmpi eq, %arg1, %c0_i32 : i32
    %1 = arith.extui %0 : i1 to i32
    %c0_i32_0 = arith.constant 0 : i32
    %2 = arith.cmpi ne, %1, %c0_i32_0 : i32
    scf.if %2 {
      %c0_25 = arith.constant 0 : index
      %c0_26 = arith.constant 0 : index
      %37 = vector.load %arg2[%c0_25, %c0_26] : memref<128x128xf32, #tpu.memory_space<vmem>>, vector<128x128xf32>
      %c0_27 = arith.constant 0 : index
      %c0_28 = arith.constant 0 : index
      %38 = vector.load %arg3[%c0_27, %c0_28] : memref<128x4xf32, #tpu.memory_space<vmem>>, vector<128x4xf32>
      %cst_29 = arith.constant dense<0.000000e+00> : vector<128x4xf32>
      %39 = tpu.matmul %37, %38, %cst_29 {dimension_numbers = #tpu.dot_dimension_numbers<[1], [0], [0], [1], [0, 0, 1, 1], [], []>} : vector<128x128xf32>, vector<128x4xf32>, vector<128x4xf32> -> vector<128x4xf32>
      %c0_30 = arith.constant 0 : index
      %c0_31 = arith.constant 0 : index
      %40 = vector.load %arg4[%c0_30, %c0_31] : memref<1x4xf32, #tpu.memory_space<vmem>>, vector<1x4xf32>
      %41 = vector.broadcast %40 : vector<1x4xf32> to vector<128x4xf32>
      %42 = arith.addf %39, %41 : vector<128x4xf32>
      %cst_32 = arith.constant dense<0xFF800000> : vector<128xf32>
      %43 = vector.multi_reduction <maximumf>, %42, %cst_32 [1] : vector<128x4xf32> to vector<128xf32>
      %44 = vector.shape_cast %43 : vector<128xf32> to vector<128x1xf32>
      %45 = vector.broadcast %44 : vector<128x1xf32> to vector<128x4xf32>
      %46 = arith.subf %42, %45 : vector<128x4xf32>
      %47 = math.exp %46 : vector<128x4xf32>
      %cst_33 = arith.constant dense<0.000000e+00> : vector<128xf32>
      %48 = vector.multi_reduction <add>, %47, %cst_33 [1] : vector<128x4xf32> to vector<128xf32>
      %49 = vector.shape_cast %48 : vector<128xf32> to vector<128x1xf32>
      %50 = vector.broadcast %49 : vector<128x1xf32> to vector<128x4xf32>
      %51 = arith.divf %47, %50 : vector<128x4xf32>
      %52 = tpu.iota {dimensions = array<i32: 1>} : vector<128x4xi32>
      %cst_34 = arith.constant dense<0xFF800000> : vector<128xf32>
      %53 = vector.multi_reduction <maximumf>, %51, %cst_34 [1] : vector<128x4xf32> to vector<128xf32>
      %54 = vector.shape_cast %53 : vector<128xf32> to vector<128x1xf32>
      %55 = vector.broadcast %54 : vector<128x1xf32> to vector<128x4xf32>
      %56 = arith.cmpf oeq, %51, %55 : vector<128x4xf32>
      %c4_i32 = arith.constant 4 : i32
      %57 = vector.broadcast %c4_i32 : i32 to vector<128x4xi32>
      %58 = arith.select %56, %52, %57 : vector<128x4xi1>, vector<128x4xi32>
      %cst_35 = arith.constant dense<2147483647> : vector<128xi32>
      %59 = vector.multi_reduction <minsi>, %58, %cst_35 [1] : vector<128x4xi32> to vector<128xi32>
      %60 = vector.shape_cast %59 : vector<128xi32> to vector<128x1xi32>
      %61 = vector.broadcast %60 : vector<128x1xi32> to vector<128x4xi32>
      %62 = arith.cmpi eq, %52, %61 : vector<128x4xi32>
      %cst_36 = arith.constant 0xFF800000 : f32
      %63 = vector.broadcast %cst_36 : f32 to vector<128x4xf32>
      %64 = arith.select %62, %63, %51 : vector<128x4xi1>, vector<128x4xf32>
      %cst_37 = arith.constant dense<0xFF800000> : vector<128xf32>
      %65 = vector.multi_reduction <maximumf>, %64, %cst_37 [1] : vector<128x4xf32> to vector<128xf32>
      %66 = vector.shape_cast %65 : vector<128xf32> to vector<128x1xf32>
      %67 = vector.broadcast %66 : vector<128x1xf32> to vector<128x4xf32>
      %68 = arith.cmpf oeq, %64, %67 : vector<128x4xf32>
      %c4_i32_38 = arith.constant 4 : i32
      %69 = vector.broadcast %c4_i32_38 : i32 to vector<128x4xi32>
      %70 = arith.select %68, %52, %69 : vector<128x4xi1>, vector<128x4xi32>
      %cst_39 = arith.constant dense<2147483647> : vector<128xi32>
      %71 = vector.multi_reduction <minsi>, %70, %cst_39 [1] : vector<128x4xi32> to vector<128xi32>
      %72 = vector.shape_cast %71 : vector<128xi32> to vector<128x1xi32>
      %73 = vector.broadcast %60 : vector<128x1xi32> to vector<128x4xi32>
      %74 = arith.cmpi eq, %52, %73 : vector<128x4xi32>
      %75 = vector.broadcast %72 : vector<128x1xi32> to vector<128x4xi32>
      %76 = arith.cmpi eq, %52, %75 : vector<128x4xi32>
      %77 = arith.ori %74, %76 : vector<128x4xi1>
      %cst_40 = arith.constant 0.000000e+00 : f32
      %78 = vector.broadcast %cst_40 : f32 to vector<128x4xf32>
      %79 = arith.select %77, %51, %78 : vector<128x4xi1>, vector<128x4xf32>
      %c0_41 = arith.constant 0 : index
      %c0_42 = arith.constant 0 : index
      %80 = vector.load %arg10[%c0_41, %c0_42] : memref<128x4xf32, #tpu.memory_space<vmem>>, vector<128x4xf32>
      tpu.vector_store %arg10[%c0_41, %c0_42], %79 {strides = array<i32>} : memref<128x4xf32, #tpu.memory_space<vmem>>, vector<128x4xf32>,
      %81 = arith.truncf %37 : vector<128x128xf32> to vector<128x128xbf16>
      %c0_43 = arith.constant 0 : index
      %c0_44 = arith.constant 0 : index
      %82 = vector.load %arg11[%c0_43, %c0_44] : memref<128x128xbf16, #tpu.memory_space<vmem>>, vector<128x128xbf16>
      tpu.vector_store %arg11[%c0_43, %c0_44], %81 {strides = array<i32>} : memref<128x128xbf16, #tpu.memory_space<vmem>>, vector<128x128xbf16>,
      %cst_45 = arith.constant 0.000000e+00 : f32
      %83 = vector.broadcast %cst_45 : f32 to vector<128x128xf32>
      %c0_46 = arith.constant 0 : index
      %c0_47 = arith.constant 0 : index
      %84 = vector.load %arg12[%c0_46, %c0_47] : memref<128x128xf32, #tpu.memory_space<vmem>>, vector<128x128xf32>
      tpu.vector_store %arg12[%c0_46, %c0_47], %83 {strides = array<i32>} : memref<128x128xf32, #tpu.memory_space<vmem>>, vector<128x128xf32>,
    } else {
    }
    %c0 = arith.constant 0 : index
    %c0_1 = arith.constant 0 : index
    %3 = vector.load %arg11[%c0, %c0_1] : memref<128x128xbf16, #tpu.memory_space<vmem>>, vector<128x128xbf16>
    %c0_2 = arith.constant 0 : index
    %c0_3 = arith.constant 0 : index
    %c0_4 = arith.constant 0 : index
    %4 = vector.load %arg5[%c0_2, %c0_3, %c0_4] : memref<1x128x256xbf16, #tpu.memory_space<vmem>>, vector<1x128x256xbf16>
    %5 = vector.shape_cast %4 : vector<1x128x256xbf16> to vector<128x256xbf16>
    %c0_5 = arith.constant 0 : index
    %c0_6 = arith.constant 0 : index
    %c0_7 = arith.constant 0 : index
    %6 = vector.load %arg7[%c0_5, %c0_6, %c0_7] : memref<1x256x128xbf16, #tpu.memory_space<vmem>>, vector<1x256x128xbf16>
    %7 = vector.shape_cast %6 : vector<1x256x128xbf16> to vector<256x128xbf16>
    %cst = arith.constant dense<0.000000e+00> : vector<128x256xf32>
    %8 = tpu.matmul %3, %5, %cst {dimension_numbers = #tpu.dot_dimension_numbers<[1], [0], [0], [1], [0, 0, 1, 1], [], []>} : vector<128x128xbf16>, vector<128x256xbf16>, vector<128x256xf32> -> vector<128x256xf32>
    %c0_8 = arith.constant 0 : index
    %c0_9 = arith.constant 0 : index
    %c0_10 = arith.constant 0 : index
    %9 = vector.load %arg6[%c0_8, %c0_9, %c0_10] : memref<1x1x256xf32, #tpu.memory_space<vmem>>, vector<1x1x256xf32>
    %10 = vector.shape_cast %9 : vector<1x1x256xf32> to vector<1x256xf32>
    %11 = vector.broadcast %10 : vector<1x256xf32> to vector<128x256xf32>
    %12 = arith.addf %8, %11 : vector<128x256xf32>
    %cst_11 = arith.constant 0.000000e+00 : f32
    %13 = vector.broadcast %cst_11 : f32 to vector<128x256xf32>
    %14 = arith.maximumf %12, %13 : vector<128x256xf32>
    %15 = arith.truncf %14 : vector<128x256xf32> to vector<128x256xbf16>
    %cst_12 = arith.constant dense<0.000000e+00> : vector<128x128xf32>
    %16 = tpu.matmul %15, %7, %cst_12 {dimension_numbers = #tpu.dot_dimension_numbers<[1], [0], [0], [1], [0, 0, 1, 1], [], []>} : vector<128x256xbf16>, vector<256x128xbf16>, vector<128x128xf32> -> vector<128x128xf32>
    %c0_13 = arith.constant 0 : index
    %c0_14 = arith.constant 0 : index
    %c0_15 = arith.constant 0 : index
    %17 = vector.load %arg8[%c0_13, %c0_14, %c0_15] : memref<1x1x128xf32, #tpu.memory_space<vmem>>, vector<1x1x128xf32>
    %18 = vector.shape_cast %17 : vector<1x1x128xf32> to vector<1x128xf32>
    %19 = vector.broadcast %18 : vector<1x128xf32> to vector<128x128xf32>
    %20 = arith.addf %16, %19 : vector<128x128xf32>
    %21 = tpu.iota {dimensions = array<i32: 1>} : vector<128x4xi32>
    %22 = vector.broadcast %arg1 : i32 to vector<128x4xi32>
    %23 = arith.cmpi eq, %21, %22 : vector<128x4xi32>
    %c0_16 = arith.constant 0 : index
    %c0_17 = arith.constant 0 : index
    %24 = vector.load %arg10[%c0_16, %c0_17] : memref<128x4xf32, #tpu.memory_space<vmem>>, vector<128x4xf32>
    %cst_18 = arith.constant 0.000000e+00 : f32
    %25 = vector.broadcast %cst_18 : f32 to vector<128x4xf32>
    %26 = arith.select %23, %24, %25 : vector<128x4xi1>, vector<128x4xf32>
    %cst_19 = arith.constant dense<0.000000e+00> : vector<128xf32>
    %27 = vector.multi_reduction <add>, %26, %cst_19 [1] : vector<128x4xf32> to vector<128xf32>
    %28 = vector.shape_cast %27 : vector<128xf32> to vector<128x1xf32>
    %c0_20 = arith.constant 0 : index
    %c0_21 = arith.constant 0 : index
    %29 = vector.load %arg12[%c0_20, %c0_21] : memref<128x128xf32, #tpu.memory_space<vmem>>, vector<128x128xf32>
    %30 = vector.broadcast %28 : vector<128x1xf32> to vector<128x128xf32>
    %31 = arith.mulf %30, %20 : vector<128x128xf32>
    %32 = arith.addf %29, %31 : vector<128x128xf32>
    %c0_22 = arith.constant 0 : index
    %c0_23 = arith.constant 0 : index
    %33 = vector.load %arg12[%c0_22, %c0_23] : memref<128x128xf32, #tpu.memory_space<vmem>>, vector<128x128xf32>
    tpu.vector_store %arg12[%c0_22, %c0_23], %32 {strides = array<i32>} : memref<128x128xf32, #tpu.memory_space<vmem>>, vector<128x128xf32>,
    %c3_i32 = arith.constant 3 : i32
    %34 = arith.cmpi eq, %arg1, %c3_i32 : i32
    %35 = arith.extui %34 : i1 to i32
    %c0_i32_24 = arith.constant 0 : i32
    %36 = arith.cmpi ne, %35, %c0_i32_24 : i32
    scf.if %36 {
      %c0_25 = arith.constant 0 : index
      %c0_26 = arith.constant 0 : index
      %37 = vector.load %arg12[%c0_25, %c0_26] : memref<128x128xf32, #tpu.memory_space<vmem>>, vector<128x128xf32>
      %c0_27 = arith.constant 0 : index
      %c0_28 = arith.constant 0 : index
      %38 = vector.load %arg9[%c0_27, %c0_28] : memref<128x128xf32, #tpu.memory_space<vmem>>, vector<128x128xf32>
      tpu.vector_store %arg9[%c0_27, %c0_28], %37 {strides = array<i32>} : memref<128x128xf32, #tpu.memory_space<vmem>>, vector<128x128xf32>,
    } else {
    }
    return
  }
  func.func @transform_0(%arg0: i32, %arg1: i32) -> (i32, i32) {
    %c0_i32 = arith.constant 0 : i32
    %c0_i32_0 = arith.constant 0 : i32
    return %arg0, %c0_i32 : i32, i32
  }
  func.func @transform_1(%arg0: i32, %arg1: i32) -> (i32, i32) {
    %c0_i32 = arith.constant 0 : i32
    %c0_i32_0 = arith.constant 0 : i32
    %c0_i32_1 = arith.constant 0 : i32
    return %c0_i32, %c0_i32_0 : i32, i32
  }
  func.func @transform_2(%arg0: i32, %arg1: i32) -> (i32, i32) {
    %c0_i32 = arith.constant 0 : i32
    %c0_i32_0 = arith.constant 0 : i32
    %c0_i32_1 = arith.constant 0 : i32
    return %c0_i32, %c0_i32_0 : i32, i32
  }
  func.func @transform_3(%arg0: i32, %arg1: i32) -> (i32, i32, i32) {
    %c0_i32 = arith.constant 0 : i32
    %c0_i32_0 = arith.constant 0 : i32
    %c0_i32_1 = arith.constant 0 : i32
    return %arg1, %c0_i32, %c0_i32_0 : i32, i32, i32
  }
  func.func @transform_4(%arg0: i32, %arg1: i32) -> (i32, i32, i32) {
    %c0_i32 = arith.constant 0 : i32
    %c0_i32_0 = arith.constant 0 : i32
    %c0_i32_1 = arith.constant 0 : i32
    return %arg1, %c0_i32, %c0_i32_0 : i32, i32, i32
  }
  func.func @transform_5(%arg0: i32, %arg1: i32) -> (i32, i32, i32) {
    %c0_i32 = arith.constant 0 : i32
    %c0_i32_0 = arith.constant 0 : i32
    %c0_i32_1 = arith.constant 0 : i32
    return %arg1, %c0_i32, %c0_i32_0 : i32, i32, i32
  }
  func.func @transform_6(%arg0: i32, %arg1: i32) -> (i32, i32, i32) {
    %c0_i32 = arith.constant 0 : i32
    %c0_i32_0 = arith.constant 0 : i32
    %c0_i32_1 = arith.constant 0 : i32
    return %arg1, %c0_i32, %c0_i32_0 : i32, i32, i32
  }
  func.func @transform_7(%arg0: i32, %arg1: i32) -> (i32, i32) {
    %c0_i32 = arith.constant 0 : i32
    %c0_i32_0 = arith.constant 0 : i32
    return %arg0, %c0_i32 : i32, i32
  }
}

</mosaic_0001>

<llo_original>
// kernel: tpu_custom_call.1
$region0: #{tpu_custom_call.1}
  #allocation0 [shape = 'u32[]', space=smem, size = 0x4, offset = 0x4, fixed_abs, tag = 'smem constant byte address 0x4 - core index']
  #allocation1 [shape = 'u32[144,128]{1,0:T(1,128)}', space=vmem, size = 0x12000, scoped, tag = 'internal scratch']
  #allocation2 [shape = 'f32[128,4]{1,0:T(8,128)}', space=vmem, size = 0x10000, scoped, tag = 'scratch operand']
  #allocation3 [shape = 'bf16[128,128]{1,0:T(16,128)(2,1)}', space=vmem, size = 0x8000, scoped, tag = 'scratch operand']
  #allocation4 [shape = 'f32[128,128]{1,0:T(8,128)}', space=vmem, size = 0x10000, scoped, tag = 'scratch operand']
  %s0 = inlined_call_operand.hbm [shape: f32[128,128], index: 0, kind: input, shape index: {}]
  %s1 = inlined_call_operand.hbm [shape: f32[128,4], index: 1, kind: input, shape index: {}]
  %s2 = inlined_call_operand.hbm [shape: f32[1,4], index: 2, kind: input, shape index: {}]
  %s3 = inlined_call_operand.hbm [shape: bf16[4,128,256], index: 3, kind: input, shape index: {}]
  %s4 = inlined_call_operand.hbm [shape: f32[4,1,256], index: 4, kind: input, shape index: {}]
  %s5 = inlined_call_operand.hbm [shape: bf16[4,256,128], index: 5, kind: input, shape index: {}]
  %s6 = inlined_call_operand.hbm [shape: f32[4,1,128], index: 6, kind: input, shape index: {}]
  %s7 = inlined_call_operand.hbm [shape: f32[128,128], index: 7, kind: output, shape index: {}]
  %s8 = sld [smem:[#allocation0]]
  $region97: #{tpu_custom_call.1} parent=0
    _
  %s10 = ssub.s32 1, %s8
  %s11 = scalar_select 0, %s10, %s8
  $region1: #{tpu_custom_call.1} parent=0
    #allocation5 [shape = 'u8[65536]{0}', space=vmem, size = 0x10000, scoped, tag = 'input window, operand 0, single buffered']
    #allocation6 [shape = 's32[2]{0}', space=sflag, size = 0x8, scoped, tag = 'scoped memory for tpu_custom_call.1']
    #allocation7 [shape = 's32[2]{0}', space=sflag, size = 0x8, scoped, tag = 'scoped memory for tpu_custom_call.1']
    #allocation8 [shape = 'u8[65536]{0}', space=vmem, size = 0x10000, scoped, tag = 'input window, operand 1, single buffered']
    #allocation9 [shape = 's32[1]{0}', space=sflag, size = 0x4, scoped, tag = 'scoped memory for tpu_custom_call.1']
    #allocation10 [shape = 'u8[512]{0}', space=vmem, size = 0x400, scoped, tag = 'input window, operand 2, single buffered']
    #allocation11 [shape = 'u8[131072]{0}', space=vmem, size = 0x20000, scoped, tag = 'input window, operand 3']
    #allocation12 [shape = 's32[2]{0}', space=sflag, size = 0x8, scoped, tag = 'scoped memory for tpu_custom_call.1']
    #allocation13 [shape = 'u8[2048]{0}', space=vmem, size = 0x800, scoped, tag = 'input window, operand 4']
    #allocation14 [shape = 'u8[131072]{0}', space=vmem, size = 0x20000, scoped, tag = 'input window, operand 5']
    #allocation15 [shape = 's32[2]{0}', space=sflag, size = 0x8, scoped, tag = 'scoped memory for tpu_custom_call.1']
    #allocation16 [shape = 'u8[1024]{0}', space=vmem, size = 0x400, scoped, tag = 'input window, operand 6']
    #allocation17 [shape = 'u8[65536]{0}', space=vmem, size = 0x10000, scoped, tag = 'output window, operand 0, single buffered']
    %12 = vsyncpa [#allocation6], 0
    %13 = vsyncpa [#allocation9], 0
    %14 = vsyncpa [#allocation12], 0
    %s15 = scalar_lea.sflag [#allocation12], 1
    %16 = vsyncpa %s15, 0
    %17 = vsyncpa [#allocation15], 0
    %s18 = scalar_lea.sflag [#allocation15], 1
    %19 = vsyncpa %s18, 0
    %20 = vsyncpa [#allocation7], 0
    loop: start=0, step=1, limit=6
    $region2: #{tpu_custom_call.1} parent=1 // loop_pre_header
      _
    $region3: #{tpu_custom_call.1} parent=1 // loop_header
      %s22 = sphi 0, %s26
      %p23 = scmp.ge.s32.totalorder %s22, 6
      %s29 = sphi 0, %s41
      %s30 = sphi 0, %s37
      %s31 = sphi 0, %s29
      %s32 = sphi 0, %s30
      %s33 = sphi 0, %s31
      %s34 = sphi 0, %s32
      %s44 = sphi 0, %s46
      %s47 = sphi 0, %s44
      %s48 = sphi 0, %s47
      %s64 = sphi 0, %s48
      %s68 = sphi 0, %s68
      %s70 = sphi 0, %s68
      %s71 = sphi 0, %s70
      %s85 = sphi 0, %s71
      %s89 = sphi 0, %s89
      %s91 = sphi 0, %s89
      %s92 = sphi 0, %s91
      %s106 = sphi 0, %s92
      %s112 = sphi 0, %s114
      %s115 = sphi 0, %s112
      %s116 = sphi 0, %s115
      %s132 = sphi 0, %s116
      %s138 = sphi 0, %s140
      %s141 = sphi 0, %s138
      %s142 = sphi 0, %s141
      %s158 = sphi 0, %s142
      %s164 = sphi 0, %s166
      %s167 = sphi 0, %s164
      %s168 = sphi 0, %s167
      %s184 = sphi 0, %s168
      %s190 = sphi 0, %s192
      %s193 = sphi 0, %s190
      %s194 = sphi 0, %s193
      %s210 = sphi 0, %s194
      %s216 = sphi 0, %s218
      %s219 = sphi 0, %s216
      %s220 = sphi 0, %s219
      %s236 = sphi 0, %s220
    $region4: #{tpu_custom_call.1} parent=1 // loop_header_branch
      %25 = sbr.rel (%p23) target = $region8
    $region5: #{tpu_custom_call.1} parent=1 // loop_body
      %s27 = ssub.s32 %s22, 1
      %s28 = ssub.s32 %s22, 2
      %s35 = sadd.s32 1, %s30
      %p36 = scmp.ge.s32.totalorder %s35, 4
      %s37 = scalar_select %p36, 0, %s35
      %s38 = sadd.s32 1, %s29
      %s39 = scalar_select %p36, %s38, %s29
      %p40 = scmp.ge.s32.totalorder %s39, 1
      %s41 = scalar_select %p40, 0, %s39
      %s42 = ssub.s32 %s29, %s41
      %p43 = scmp.eq.s32.totalorder %s42, 0
      %s45 = sadd.s32 %s44, 1
      %s46 = scalar_select %p43, %s44, %s45
      %p49 = pneg %p43
      %p50 = scmp.eq.s32.totalorder %s22, 3
      %p51 = por %p49, %p50
      %p52 = scmp.ne.s32.totalorder %s44, %s47
      %p53 = scmp.eq.s32.totalorder %s22, 0
      %p54 = por %p52, %p53
      %p55 = scmp.ne.s32.totalorder %s44, %s47
      %p56 = scmp.eq.s32.totalorder %s27, 3
      %p57 = por %p55, %p56
      %p58 = scmp.ne.s32.totalorder %s47, %s48
      %p59 = scmp.eq.s32.totalorder %s27, 0
      %p60 = por %p58, %p59
      %p61 = scmp.ne.s32.totalorder %s47, %s48
      %p62 = scmp.eq.s32.totalorder %s28, 3
      %p63 = por %p61, %p62
      %p65 = scmp.ne.s32.totalorder %s48, %s64
      %p66 = scmp.eq.s32.totalorder %s28, 0
      %p67 = por %p65, %p66
      %s69 = sadd.s32 %s68, 1
      %p72 = scmp.eq.s32.totalorder %s22, 3
      %p73 = scmp.ne.s32.totalorder %s68, %s70
      %p74 = scmp.eq.s32.totalorder %s22, 0
      %p75 = por %p73, %p74
      %p76 = scmp.ne.s32.totalorder %s68, %s70
      %p77 = scmp.eq.s32.totalorder %s27, 3
      %p78 = por %p76, %p77
      %p79 = scmp.ne.s32.totalorder %s70, %s71
      %p80 = scmp.eq.s32.totalorder %s27, 0
      %p81 = por %p79, %p80
      %p82 = scmp.ne.s32.totalorder %s70, %s71
      %p83 = scmp.eq.s32.totalorder %s28, 3
      %p84 = por %p82, %p83
      %p86 = scmp.ne.s32.totalorder %s71, %s85
      %p87 = scmp.eq.s32.totalorder %s28, 0
      %p88 = por %p86, %p87
      %s90 = sadd.s32 %s89, 1
      %p93 = scmp.eq.s32.totalorder %s22, 3
      %p94 = scmp.ne.s32.totalorder %s89, %s91
      %p95 = scmp.eq.s32.totalorder %s22, 0
      %p96 = por %p94, %p95
      %p97 = scmp.ne.s32.totalorder %s89, %s91
      %p98 = scmp.eq.s32.totalorder %s27, 3
      %p99 = por %p97, %p98
      %p100 = scmp.ne.s32.totalorder %s91, %s92
      %p101 = scmp.eq.s32.totalorder %s27, 0
      %p102 = por %p100, %p101
      %p103 = scmp.ne.s32.totalorder %s91, %s92
      %p104 = scmp.eq.s32.totalorder %s28, 3
      %p105 = por %p103, %p104
      %p107 = scmp.ne.s32.totalorder %s92, %s106
      %p108 = scmp.eq.s32.totalorder %s28, 0
      %p109 = por %p107, %p108
      %s110 = ssub.s32 %s30, %s37
      %p111 = scmp.eq.s32.totalorder %s110, 0
      %s113 = sadd.s32 %s112, 1
      %s114 = scalar_select %p111, %s112, %s113
      %p117 = pneg %p111
      %p118 = scmp.eq.s32.totalorder %s22, 3
      %p119 = por %p117, %p118
      %p120 = scmp.ne.s32.totalorder %s112, %s115
      %p121 = scmp.eq.s32.totalorder %s22, 0
      %p122 = por %p120, %p121
      %p123 = scmp.ne.s32.totalorder %s112, %s115
      %p124 = scmp.eq.s32.totalorder %s27, 3
      %p125 = por %p123, %p124
      %p126 = scmp.ne.s32.totalorder %s115, %s116
      %p127 = scmp.eq.s32.totalorder %s27, 0
      %p128 = por %p126, %p127
      %p129 = scmp.ne.s32.totalorder %s115, %s116
      %p130 = scmp.eq.s32.totalorder %s28, 3
      %p131 = por %p129, %p130
      %p133 = scmp.ne.s32.totalorder %s116, %s132
      %p134 = scmp.eq.s32.totalorder %s28, 0
      %p135 = por %p133, %p134
      %s136 = ssub.s32 %s30, %s37
      %p137 = scmp.eq.s32.totalorder %s136, 0
      %s139 = sadd.s32 %s138, 1
      %s140 = scalar_select %p137, %s138, %s139
      %p143 = pneg %p137
      %p144 = scmp.eq.s32.totalorder %s22, 3
      %p145 = por %p143, %p144
      %p146 = scmp.ne.s32.totalorder %s138, %s141
      %p147 = scmp.eq.s32.totalorder %s22, 0
      %p148 = por %p146, %p147
      %p149 = scmp.ne.s32.totalorder %s138, %s141
      %p150 = scmp.eq.s32.totalorder %s27, 3
      %p151 = por %p149, %p150
      %p152 = scmp.ne.s32.totalorder %s141, %s142
      %p153 = scmp.eq.s32.totalorder %s27, 0
      %p154 = por %p152, %p153
      %p155 = scmp.ne.s32.totalorder %s141, %s142
      %p156 = scmp.eq.s32.totalorder %s28, 3
      %p157 = por %p155, %p156
      %p159 = scmp.ne.s32.totalorder %s142, %s158
      %p160 = scmp.eq.s32.totalorder %s28, 0
      %p161 = por %p159, %p160
      %s162 = ssub.s32 %s30, %s37
      %p163 = scmp.eq.s32.totalorder %s162, 0
      %s165 = sadd.s32 %s164, 1
      %s166 = scalar_select %p163, %s164, %s165
      %p169 = pneg %p163
      %p170 = scmp.eq.s32.totalorder %s22, 3
      %p171 = por %p169, %p170
      %p172 = scmp.ne.s32.totalorder %s164, %s167
      %p173 = scmp.eq.s32.totalorder %s22, 0
      %p174 = por %p172, %p173
      %p175 = scmp.ne.s32.totalorder %s164, %s167
      %p176 = scmp.eq.s32.totalorder %s27, 3
      %p177 = por %p175, %p176
      %p178 = scmp.ne.s32.totalorder %s167, %s168
      %p179 = scmp.eq.s32.totalorder %s27, 0
      %p180 = por %p178, %p179
      %p181 = scmp.ne.s32.totalorder %s167, %s168
      %p182 = scmp.eq.s32.totalorder %s28, 3
      %p183 = por %p181, %p182
      %p185 = scmp.ne.s32.totalorder %s168, %s184
      %p186 = scmp.eq.s32.totalorder %s28, 0
      %p187 = por %p185, %p186
      %s188 = ssub.s32 %s30, %s37
      %p189 = scmp.eq.s32.totalorder %s188, 0
      %s191 = sadd.s32 %s190, 1
      %s192 = scalar_select %p189, %s190, %s191
      %p195 = pneg %p189
      %p196 = scmp.eq.s32.totalorder %s22, 3
      %p197 = por %p195, %p196
      %p198 = scmp.ne.s32.totalorder %s190, %s193
      %p199 = scmp.eq.s32.totalorder %s22, 0
      %p200 = por %p198, %p199
      %p201 = scmp.ne.s32.totalorder %s190, %s193
      %p202 = scmp.eq.s32.totalorder %s27, 3
      %p203 = por %p201, %p202
      %p204 = scmp.ne.s32.totalorder %s193, %s194
      %p205 = scmp.eq.s32.totalorder %s27, 0
      %p206 = por %p204, %p205
      %p207 = scmp.ne.s32.totalorder %s193, %s194
      %p208 = scmp.eq.s32.totalorder %s28, 3
      %p209 = por %p207, %p208
      %p211 = scmp.ne.s32.totalorder %s194, %s210
      %p212 = scmp.eq.s32.totalorder %s28, 0
      %p213 = por %p211, %p212
      %s214 = ssub.s32 %s29, %s41
      %p215 = scmp.eq.s32.totalorder %s214, 0
      %s217 = sadd.s32 %s216, 1
      %s218 = scalar_select %p215, %s216, %s217
      %p221 = pneg %p215
      %p222 = scmp.eq.s32.totalorder %s22, 3
      %p223 = por %p221, %p222
      %p224 = scmp.ne.s32.totalorder %s216, %s219
      %p225 = scmp.eq.s32.totalorder %s22, 0
      %p226 = por %p224, %p225
      %p227 = scmp.ne.s32.totalorder %s216, %s219
      %p228 = scmp.eq.s32.totalorder %s27, 3
      %p229 = por %p227, %p228
      %p230 = scmp.ne.s32.totalorder %s219, %s220
      %p231 = scmp.eq.s32.totalorder %s27, 0
      %p232 = por %p230, %p231
      %p233 = scmp.ne.s32.totalorder %s219, %s220
      %p234 = scmp.eq.s32.totalorder %s28, 3
      %p235 = por %p233, %p234
      %p237 = scmp.ne.s32.totalorder %s220, %s236
      %p238 = scmp.eq.s32.totalorder %s28, 0
      %p239 = por %p237, %p238
      %p240 = scmp.le.s32.totalorder 1, %s22
      %p241 = scmp.lt.s32.totalorder %s22, 5
      %p242 = pnand %p240, %p241
      %p243 = pneg %p242
      // Predicated region
      $region9: #{tpu_custom_call.1} parent=5 // pred_check
        _
      $region10: #{tpu_custom_call.1} parent=5 // pred_check_branch
        %245 = sbr.rel (%p242) target = $region12
      $region11: #{tpu_custom_call.1} parent=5 // pred_region
        %s246 = ssub.s32 %s22, 1
        // Predicated region
        $region13: #{tpu_custom_call.1} parent=11 // pred_check
          %p247 = pneg %p60
        $region14: #{tpu_custom_call.1} parent=11 // pred_check_branch
          %249 = sbr.rel (%p247) target = $region16
        $region15: #{tpu_custom_call.1} parent=11 // pred_region
          %s250 = smul.u32 16, %s31
          %s252 = ssub.s32 2048, 2048
          %253 = vsyncadd [#allocation6], %s252
          %s254 = smul.addr %s250, 128
          %s255 = scalar_lea.hbm %s0, %s254
          %s256 = sshll.u32 [#allocation5], 4
          %s257 = int_to_ptr.vmem [resolvable:$true] %s256
          %262 = dma.hbm_to_vmem [thread:$0]  %s255, 2048, %s257, [#allocation6], 128, 128, 8
        $region16: #{tpu_custom_call.1} parent=11 // pred_fallthru
          _
        // Predicated region
        $region17: #{tpu_custom_call.1} parent=11 // pred_check
          %p263 = pneg %p81
        $region18: #{tpu_custom_call.1} parent=11 // pred_check_branch
          %265 = sbr.rel (%p263) target = $region20
        $region19: #{tpu_custom_call.1} parent=11 // pred_region
          %s267 = ssub.s32 2048, 2048
          %268 = vsyncadd [#allocation9], %s267
          %s269 = sshll.u32 [#allocation8], 4
          %s270 = int_to_ptr.vmem [resolvable:$true] %s269
          %275 = dma.hbm_to_vmem [thread:$0]  %s1, 2048, %s270, [#allocation9], 128, 128, 8
        $region20: #{tpu_custom_call.1} parent=11 // pred_fallthru
          _
        // Predicated region
        $region21: #{tpu_custom_call.1} parent=11 // pred_check
          %p276 = pneg %p102
        $region22: #{tpu_custom_call.1} parent=11 // pred_check_branch
          %278 = sbr.rel (%p276) target = $region24
        $region23: #{tpu_custom_call.1} parent=11 // pred_region
          %s280 = ssub.s32 16, 16
          %281 = vsyncadd [#allocation9], %s280
          %s283 = sshll.u32 [#allocation10], 4
          %s284 = int_to_ptr.vmem [resolvable:$true] %s283
          %286 = dma.hbm_to_vmem [thread:$0]  %s2, 16, %s284, [#allocation9]
        $region24: #{tpu_custom_call.1} parent=11 // pred_fallthru
          _
      $region12: #{tpu_custom_call.1} parent=5 // pred_fallthru
        _
      %p287 = scmp.lt.s32.totalorder %s22, 4
      // Predicated region
      $region25: #{tpu_custom_call.1} parent=5 // pred_check
        %p288 = pneg %p287
      $region26: #{tpu_custom_call.1} parent=5 // pred_check_branch
        %290 = sbr.rel (%p288) target = $region28
      $region27: #{tpu_custom_call.1} parent=5 // pred_region
        // Predicated region
        $region29: #{tpu_custom_call.1} parent=27 // pred_check
          %p291 = pneg %p122
        $region30: #{tpu_custom_call.1} parent=27 // pred_check_branch
          %293 = sbr.rel (%p291) target = $region32
        $region31: #{tpu_custom_call.1} parent=27 // pred_region
          %s294 = sand.u32 %s22, 1
          %s295 = scalar_lea.sflag [#allocation12], %s294
          %s296 = sand.u32 %s112, 1
          %s297 = smul.addr %s296, 128
          %s298 = scalar_lea.vmem [#allocation11], %s297
          %s300 = ssub.s32 2048, 2048
          %301 = vsyncadd %s295, %s300
          %s302 = smul.addr %s30, 32
          %s303 = smul.addr %s302, 64
          %s304 = scalar_lea.hbm %s3, %s303
          %s305 = sshll.u32 %s298, 4
          %s306 = int_to_ptr.vmem [resolvable:$true] %s305
          %311 = dma.hbm_to_vmem [thread:$0]  %s304, 2048, %s306, %s295, 128, 128, 8
        $region32: #{tpu_custom_call.1} parent=27 // pred_fallthru
          _
        // Predicated region
        $region33: #{tpu_custom_call.1} parent=27 // pred_check
          %p312 = pneg %p148
        $region34: #{tpu_custom_call.1} parent=27 // pred_check_branch
          %314 = sbr.rel (%p312) target = $region36
        $region35: #{tpu_custom_call.1} parent=27 // pred_region
          %s315 = sand.u32 %s22, 1
          %s316 = scalar_lea.sflag [#allocation12], %s315
          %s317 = sand.u32 %s138, 1
          %s318 = smul.addr %s317, 2
          %s319 = scalar_lea.vmem [#allocation13], %s318
          %s321 = ssub.s32 32, 32
          %322 = vsyncadd %s316, %s321
          %s323 = smul.addr %s30, 2
          %s324 = smul.addr %s323, 16
          %s325 = scalar_lea.hbm %s4, %s324
          %s327 = sshll.u32 %s319, 4
          %s328 = int_to_ptr.vmem [resolvable:$true] %s327
          %330 = dma.hbm_to_vmem [thread:$0]  %s325, 32, %s328, %s316
        $region36: #{tpu_custom_call.1} parent=27 // pred_fallthru
          _
        // Predicated region
        $region37: #{tpu_custom_call.1} parent=27 // pred_check
          %p331 = pneg %p174
        $region38: #{tpu_custom_call.1} parent=27 // pred_check_branch
          %333 = sbr.rel (%p331) target = $region40
        $region39: #{tpu_custom_call.1} parent=27 // pred_region
          %s334 = sand.u32 %s22, 1
          %s335 = scalar_lea.sflag [#allocation15], %s334
          %s336 = sand.u32 %s164, 1
          %s337 = smul.addr %s336, 128
          %s338 = scalar_lea.vmem [#allocation14], %s337
          %s340 = ssub.s32 2048, 2048
          %341 = vsyncadd %s335, %s340
          %s342 = smul.addr %s30, 32
          %s343 = smul.addr %s342, 64
          %s344 = scalar_lea.hbm %s5, %s343
          %s345 = sshll.u32 %s338, 4
          %s346 = int_to_ptr.vmem [resolvable:$true] %s345
          %351 = dma.hbm_to_vmem [thread:$0]  %s344, 2048, %s346, %s335, 64, 64, 4
        $region40: #{tpu_custom_call.1} parent=27 // pred_fallthru
          _
        // Predicated region
        $region41: #{tpu_custom_call.1} parent=27 // pred_check
          %p352 = pneg %p200
        $region42: #{tpu_custom_call.1} parent=27 // pred_check_branch
          %354 = sbr.rel (%p352) target = $region44
        $region43: #{tpu_custom_call.1} parent=27 // pred_region
          %s355 = sand.u32 %s22, 1
          %s356 = scalar_lea.sflag [#allocation15], %s355
          %s357 = sand.u32 %s190, 1
          %s358 = scalar_lea.vmem [#allocation16], %s357
          %s360 = ssub.s32 16, 16
          %361 = vsyncadd %s356, %s360
          %s362 = smul.addr %s30, 16
          %s363 = scalar_lea.hbm %s6, %s362
          %s365 = sshll.u32 %s358, 4
          %s366 = int_to_ptr.vmem [resolvable:$true] %s365
          %368 = dma.hbm_to_vmem [thread:$0]  %s363, 16, %s366, %s356
        $region44: #{tpu_custom_call.1} parent=27 // pred_fallthru
          _
      $region28: #{tpu_custom_call.1} parent=5 // pred_fallthru
        _
      %p369 = scmp.le.s32.totalorder 1, %s22
      %p370 = scmp.lt.s32.totalorder %s22, 5
      %p371 = pnand %p369, %p370
      %p372 = pneg %p371
      // Predicated region
      $region45: #{tpu_custom_call.1} parent=5 // pred_check
        _
      $region46: #{tpu_custom_call.1} parent=5 // pred_check_branch
        %374 = sbr.rel (%p371) target = $region48
      $region47: #{tpu_custom_call.1} parent=5 // pred_region
        %s375 = ssub.s32 %s22, 1
        // Predicated region
        $region49: #{tpu_custom_call.1} parent=47 // pred_check
          %p376 = pneg %p60
        $region50: #{tpu_custom_call.1} parent=47 // pred_check_branch
          %378 = sbr.rel (%p376) target = $region52
        $region51: #{tpu_custom_call.1} parent=47 // pred_region
          %379 = dma.done [#allocation6], 2048
        $region52: #{tpu_custom_call.1} parent=47 // pred_fallthru
          _
        // Predicated region
        $region53: #{tpu_custom_call.1} parent=47 // pred_check
          %p380 = pneg %p81
        $region54: #{tpu_custom_call.1} parent=47 // pred_check_branch
          %382 = sbr.rel (%p380) target = $region56
        $region55: #{tpu_custom_call.1} parent=47 // pred_region
          %383 = dma.done [#allocation9], 2048
        $region56: #{tpu_custom_call.1} parent=47 // pred_fallthru
          _
        // Predicated region
        $region57: #{tpu_custom_call.1} parent=47 // pred_check
          %p384 = pneg %p102
        $region58: #{tpu_custom_call.1} parent=47 // pred_check_branch
          %386 = sbr.rel (%p384) target = $region60
        $region59: #{tpu_custom_call.1} parent=47 // pred_region
          %387 = dma.done [#allocation9], 16
        $region60: #{tpu_custom_call.1} parent=47 // pred_fallthru
          _
        %s388 = sand.u32 %s27, 1
        %s389 = scalar_lea.sflag [#allocation12], %s388
        %s390 = sand.u32 %s115, 1
        %s391 = smul.addr %s390, 128
        %s392 = scalar_lea.vmem [#allocation11], %s391
        // Predicated region
        $region61: #{tpu_custom_call.1} parent=47 // pred_check
          %p393 = pneg %p128
        $region62: #{tpu_custom_call.1} parent=47 // pred_check_branch
          %395 = sbr.rel (%p393) target = $region64
        $region63: #{tpu_custom_call.1} parent=47 // pred_region
          %396 = dma.done %s389, 2048
        $region64: #{tpu_custom_call.1} parent=47 // pred_fallthru
          _
        %s397 = sand.u32 %s27, 1
        %s398 = scalar_lea.sflag [#allocation12], %s397
        %s399 = sand.u32 %s141, 1
        %s400 = smul.addr %s399, 2
        %s401 = scalar_lea.vmem [#allocation13], %s400
        // Predicated region
        $region65: #{tpu_custom_call.1} parent=47 // pred_check
          %p402 = pneg %p154
        $region66: #{tpu_custom_call.1} parent=47 // pred_check_branch
          %404 = sbr.rel (%p402) target = $region68
        $region67: #{tpu_custom_call.1} parent=47 // pred_region
          %405 = dma.done %s398, 32
        $region68: #{tpu_custom_call.1} parent=47 // pred_fallthru
          _
        %s406 = sand.u32 %s27, 1
        %s407 = scalar_lea.sflag [#allocation15], %s406
        %s408 = sand.u32 %s167, 1
        %s409 = smul.addr %s408, 128
        %s410 = scalar_lea.vmem [#allocation14], %s409
        // Predicated region
        $region69: #{tpu_custom_call.1} parent=47 // pred_check
          %p411 = pneg %p180
        $region70: #{tpu_custom_call.1} parent=47 // pred_check_branch
          %413 = sbr.rel (%p411) target = $region72
        $region71: #{tpu_custom_call.1} parent=47 // pred_region
          %414 = dma.done %s407, 2048
        $region72: #{tpu_custom_call.1} parent=47 // pred_fallthru
          _
        %s415 = sand.u32 %s27, 1
        %s416 = scalar_lea.sflag [#allocation15], %s415
        %s417 = sand.u32 %s193, 1
        %s418 = scalar_lea.vmem [#allocation16], %s417
        // Predicated region
        $region73: #{tpu_custom_call.1} parent=47 // pred_check
          %p419 = pneg %p206
        $region74: #{tpu_custom_call.1} parent=47 // pred_check_branch
          %421 = sbr.rel (%p419) target = $region76
        $region75: #{tpu_custom_call.1} parent=47 // pred_region
          %422 = dma.done %s416, 16
        $region76: #{tpu_custom_call.1} parent=47 // pred_fallthru
          _
        %p423 = pneg %p60
        %p424 = pneg %p57
        %p425 = pneg %p81
        %p426 = pneg %p78
        %p427 = pneg %p102
        %p428 = pneg %p99
        %s429 = sand.u32 %s27, 1
        %s430 = scalar_lea.sflag [#allocation12], %s429
        %s431 = sand.u32 %s115, 1
        %s432 = smul.addr %s431, 128
        %s433 = scalar_lea.vmem [#allocation11], %s432
        %p434 = pneg %p128
        %p435 = pneg %p125
        %s436 = sand.u32 %s27, 1
        %s437 = scalar_lea.sflag [#allocation12], %s436
        %s438 = sand.u32 %s141, 1
        %s439 = smul.addr %s438, 2
        %s440 = scalar_lea.vmem [#allocation13], %s439
        %p441 = pneg %p154
        %p442 = pneg %p151
        %s443 = sand.u32 %s27, 1
        %s444 = scalar_lea.sflag [#allocation15], %s443
        %s445 = sand.u32 %s167, 1
        %s446 = smul.addr %s445, 128
        %s447 = scalar_lea.vmem [#allocation14], %s446
        %p448 = pneg %p180
        %p449 = pneg %p177
        %s450 = sand.u32 %s27, 1
        %s451 = scalar_lea.sflag [#allocation15], %s450
        %s452 = sand.u32 %s193, 1
        %s453 = scalar_lea.vmem [#allocation16], %s452
        %p454 = pneg %p206
        %p455 = pneg %p203
        %p456 = pneg %p232
        %p457 = pneg %p229
        %s458 = smul.u32 16, %s31
        %s459 = smul.u32 16, %s31
        %p461 = scmp.eq.s32.totalorder %s32, 0
        // Predicated region
        $region77: #{tpu_custom_call.1} parent=47 // pred_check
          %p462 = pneg %p461
        $region78: #{tpu_custom_call.1} parent=47 // pred_check_branch
          %464 = sbr.rel (%p462) target = $region80
        $region79: #{tpu_custom_call.1} parent=47 // pred_region
          %v465 = vld [vmem:[#allocation5] sm:$0xff]
          %v466 = vld [vmem:[#allocation5 + $0x8] sm:$0xff]
          %v467 = vld [vmem:[#allocation5 + $0x10] sm:$0xff]
          %v468 = vld [vmem:[#allocation5 + $0x18] sm:$0xff]
          %v469 = vld [vmem:[#allocation5 + $0x20] sm:$0xff]
          %v470 = vld [vmem:[#allocation5 + $0x28] sm:$0xff]
          %v471 = vld [vmem:[#allocation5 + $0x30] sm:$0xff]
          %v472 = vld [vmem:[#allocation5 + $0x38] sm:$0xff]
          %v473 = vld [vmem:[#allocation5 + $0x40] sm:$0xff]
          %v474 = vld [vmem:[#allocation5 + $0x48] sm:$0xff]
          %v475 = vld [vmem:[#allocation5 + $0x50] sm:$0xff]
          %v476 = vld [vmem:[#allocation5 + $0x58] sm:$0xff]
          %v477 = vld [vmem:[#allocation5 + $0x60] sm:$0xff]
          %v478 = vld [vmem:[#allocation5 + $0x68] sm:$0xff]
          %v479 = vld [vmem:[#allocation5 + $0x70] sm:$0xff]
          %v480 = vld [vmem:[#allocation5 + $0x78] sm:$0xff]
          %v481 = vld [vmem:[#allocation8] sm:$0xff]
          %v482 = vld [vmem:[#allocation8 + $0x8] sm:$0xff]
          %v483 = vld [vmem:[#allocation8 + $0x10] sm:$0xff]
          %v484 = vld [vmem:[#allocation8 + $0x18] sm:$0xff]
          %v485 = vld [vmem:[#allocation8 + $0x20] sm:$0xff]
          %v486 = vld [vmem:[#allocation8 + $0x28] sm:$0xff]
          %v487 = vld [vmem:[#allocation8 + $0x30] sm:$0xff]
          %v488 = vld [vmem:[#allocation8 + $0x38] sm:$0xff]
          %v489 = vld [vmem:[#allocation8 + $0x40] sm:$0xff]
          %v490 = vld [vmem:[#allocation8 + $0x48] sm:$0xff]
          %v491 = vld [vmem:[#allocation8 + $0x50] sm:$0xff]
          %v492 = vld [vmem:[#allocation8 + $0x58] sm:$0xff]
          %v493 = vld [vmem:[#allocation8 + $0x60] sm:$0xff]
          %v494 = vld [vmem:[#allocation8 + $0x68] sm:$0xff]
          %v495 = vld [vmem:[#allocation8 + $0x70] sm:$0xff]
          %v496 = vld [vmem:[#allocation8 + $0x78] sm:$0xff]
          %v497 = vld [vmem:[#allocation10] sm:$0x1]
          %v499 = vlaneseq
          %v500 = vshrl.u32 %v499, 7
          %v501 = vsub.s32 0, %v500
          %v502 = vrot.slane %v497, %v501
          %504 = vmatprep.subr.mxu0 0.0
          %505 = vmatpush1.msra.mxu0 %v481
          %506 = vmatprep.subr.mxu0 0.0
          %507 = vmatpush1.msra.mxu0 %v482
          %508 = vmatprep.subr.mxu0 0.0
          %509 = vmatpush1.msra.mxu0 %v483
          %510 = vmatprep.subr.mxu0 0.0
          %511 = vmatpush1.msra.mxu0 %v484
          %512 = vmatprep.subr.mxu0 0.0
          %513 = vmatpush1.msra.mxu0 %v485
          %514 = vmatprep.subr.mxu0 0.0
          %515 = vmatpush1.msra.mxu0 %v486
          %516 = vmatprep.subr.mxu0 0.0
          %517 = vmatpush1.msra.mxu0 %v487
          %518 = vmatprep.subr.mxu0 0.0
          %519 = vmatpush1.msra.mxu0 %v488
          %520 = vmatprep.subr.mxu0 0.0
          %521 = vmatpush1.msra.mxu0 %v489
          %522 = vmatprep.subr.mxu0 0.0
          %523 = vmatpush1.msra.mxu0 %v490
          %524 = vmatprep.subr.mxu0 0.0
          %525 = vmatpush1.msra.mxu0 %v491
          %526 = vmatprep.subr.mxu0 0.0
          %527 = vmatpush1.msra.mxu0 %v492
          %528 = vmatprep.subr.mxu0 0.0
          %529 = vmatpush1.msra.mxu0 %v493
          %530 = vmatprep.subr.mxu0 0.0
          %531 = vmatpush1.msra.mxu0 %v494
          %532 = vmatprep.subr.mxu0 0.0
          %533 = vmatpush1.msra.mxu0 %v495
          %534 = vmatprep.subr.mxu0 0.0
          %535 = vmatpush1.msra.mxu0 %v496
          %536 = vmatprep.subr.mxu0 0.0
          %537 = vmatpush1.msra.mxu0 0.0
          %538 = vmatprep.subr.mxu0 0.0
          %539 = vmatpush1.msra.mxu0 0.0
          %540 = vmatprep.subr.mxu0 0.0
          %541 = vmatpush1.msra.mxu0 0.0
          %542 = vmatprep.subr.mxu0 0.0
          %543 = vmatpush1.msra.mxu0 0.0
          %544 = vmatprep.subr.mxu0 0.0
          %545 = vmatpush1.msra.mxu0 0.0
          %546 = vmatprep.subr.mxu0 0.0
          %547 = vmatpush1.msra.mxu0 0.0
          %548 = vmatprep.subr.mxu0 0.0
          %549 = vmatpush1.msra.mxu0 0.0
          %550 = vmatprep.subr.mxu0 0.0
          %551 = vmatpush1.msra.mxu0 0.0
          %552 = vmatprep.subr.mxu0 0.0
          %553 = vmatpush1.msra.mxu0 0.0
          %554 = vmatprep.subr.mxu0 0.0
          %555 = vmatpush1.msra.mxu0 0.0
          %556 = vmatprep.subr.mxu0 0.0
          %557 = vmatpush1.msra.mxu0 0.0
          %558 = vmatprep.subr.mxu0 0.0
          %559 = vmatpush1.msra.mxu0 0.0
          %560 = vmatprep.subr.mxu0 0.0
          %561 = vmatpush1.msra.mxu0 0.0
          %562 = vmatprep.subr.mxu0 0.0
          %563 = vmatpush1.msra.mxu0 0.0
          %564 = vmatprep.subr.mxu0 0.0
          %565 = vmatpush1.msra.mxu0 0.0
          %566 = vmatprep.subr.mxu0 0.0
          %567 = vmatpush1.msra.mxu0 0.0
          %568 = vmatprep.mubr.f32.mxu0 0.0
          %569 = vmatmul.mubr.f32.gmra.mrb[0].mxu0 %v465
          %v570 = vpop.f32.mrb[0].mxu0
          %v571 = vadd.f32 %v502, %v570
          %v572 = vpop.f32.mrb[0].mxu0
          %573 = vmatprep.mubr.f32.mxu0 0.0
          %574 = vmatmul.mubr.f32.gmra.mrb[0].mxu0 %v466
          %v575 = vpop.f32.mrb[0].mxu0
          %v576 = vadd.f32 %v502, %v575
          %v577 = vpop.f32.mrb[0].mxu0
          %578 = vmatprep.mubr.f32.mxu0 0.0
          %579 = vmatmul.mubr.f32.gmra.mrb[0].mxu0 %v467
          %v580 = vpop.f32.mrb[0].mxu0
          %v581 = vadd.f32 %v502, %v580
          %v582 = vpop.f32.mrb[0].mxu0
          %583 = vmatprep.mubr.f32.mxu0 0.0
          %584 = vmatmul.mubr.f32.gmra.mrb[0].mxu0 %v468
          %v585 = vpop.f32.mrb[0].mxu0
          %v586 = vadd.f32 %v502, %v585
          %v587 = vpop.f32.mrb[0].mxu0
          %588 = vmatprep.mubr.f32.mxu0 0.0
          %589 = vmatmul.mubr.f32.gmra.mrb[0].mxu0 %v469
          %v590 = vpop.f32.mrb[0].mxu0
          %v591 = vadd.f32 %v502, %v590
          %v592 = vpop.f32.mrb[0].mxu0
          %593 = vmatprep.mubr.f32.mxu0 0.0
          %594 = vmatmul.mubr.f32.gmra.mrb[0].mxu0 %v470
          %v595 = vpop.f32.mrb[0].mxu0
          %v596 = vadd.f32 %v502, %v595
          %v597 = vpop.f32.mrb[0].mxu0
          %598 = vmatprep.mubr.f32.mxu0 0.0
          %599 = vmatmul.mubr.f32.gmra.mrb[0].mxu0 %v471
          %v600 = vpop.f32.mrb[0].mxu0
          %v601 = vadd.f32 %v502, %v600
          %v602 = vpop.f32.mrb[0].mxu0
          %603 = vmatprep.mubr.f32.mxu0 0.0
          %604 = vmatmul.mubr.f32.gmra.mrb[0].mxu0 %v472
          %v605 = vpop.f32.mrb[0].mxu0
          %v606 = vadd.f32 %v502, %v605
          %v607 = vpop.f32.mrb[0].mxu0
          %608 = vmatprep.mubr.f32.mxu0 0.0
          %609 = vmatmul.mubr.f32.gmra.mrb[0].mxu0 %v473
          %v610 = vpop.f32.mrb[0].mxu0
          %v611 = vadd.f32 %v502, %v610
          %v612 = vpop.f32.mrb[0].mxu0
          %613 = vmatprep.mubr.f32.mxu0 0.0
          %614 = vmatmul.mubr.f32.gmra.mrb[0].mxu0 %v474
          %v615 = vpop.f32.mrb[0].mxu0
          %v616 = vadd.f32 %v502, %v615
          %v617 = vpop.f32.mrb[0].mxu0
          %618 = vmatprep.mubr.f32.mxu0 0.0
          %619 = vmatmul.mubr.f32.gmra.mrb[0].mxu0 %v475
          %v620 = vpop.f32.mrb[0].mxu0
          %v621 = vadd.f32 %v502, %v620
          %v622 = vpop.f32.mrb[0].mxu0
          %623 = vmatprep.mubr.f32.mxu0 0.0
          %624 = vmatmul.mubr.f32.gmra.mrb[0].mxu0 %v476
          %v625 = vpop.f32.mrb[0].mxu0
          %v626 = vadd.f32 %v502, %v625
          %v627 = vpop.f32.mrb[0].mxu0
          %628 = vmatprep.mubr.f32.mxu0 0.0
          %629 = vmatmul.mubr.f32.gmra.mrb[0].mxu0 %v477
          %v630 = vpop.f32.mrb[0].mxu0
          %v631 = vadd.f32 %v502, %v630
          %v632 = vpop.f32.mrb[0].mxu0
          %633 = vmatprep.mubr.f32.mxu0 0.0
          %634 = vmatmul.mubr.f32.gmra.mrb[0].mxu0 %v478
          %v635 = vpop.f32.mrb[0].mxu0
          %v636 = vadd.f32 %v502, %v635
          %v637 = vpop.f32.mrb[0].mxu0
          %638 = vmatprep.mubr.f32.mxu0 0.0
          %639 = vmatmul.mubr.f32.gmra.mrb[0].mxu0 %v479
          %v640 = vpop.f32.mrb[0].mxu0
          %v641 = vadd.f32 %v502, %v640
          %v642 = vpop.f32.mrb[0].mxu0
          %643 = vmatprep.mubr.f32.mxu0 0.0
          %644 = vmatmul.mubr.f32.gmra.mrb[0].mxu0 %v480
          %v645 = vpop.f32.mrb[0].mxu0
          %v646 = vadd.f32 %v502, %v645
          %v647 = vpop.f32.mrb[0].mxu0
          %648 = vdwg.mxu0
          %vm649 = vcmask 31744
          %v650 = vsel %vm649, %v571, -inf
          %651 = vmax.xlane.f32.xlu0 %v650
          %v652 = vpop.xlane.xlu0 %651
          %v653 = vsel %vm649, %v576, -inf
          %654 = vmax.xlane.f32.xlu0 %v653
          %v655 = vpop.xlane.xlu0 %654
          %v656 = vsel %vm649, %v581, -inf
          %657 = vmax.xlane.f32.xlu0 %v656
          %v658 = vpop.xlane.xlu0 %657
          %v659 = vsel %vm649, %v586, -inf
          %660 = vmax.xlane.f32.xlu0 %v659
          %v661 = vpop.xlane.xlu0 %660
          %v662 = vsel %vm649, %v591, -inf
          %663 = vmax.xlane.f32.xlu0 %v662
          %v664 = vpop.xlane.xlu0 %663
          %v665 = vsel %vm649, %v596, -inf
          %666 = vmax.xlane.f32.xlu0 %v665
          %v667 = vpop.xlane.xlu0 %666
          %v668 = vsel %vm649, %v601, -inf
          %669 = vmax.xlane.f32.xlu0 %v668
          %v670 = vpop.xlane.xlu0 %669
          %v671 = vsel %vm649, %v606, -inf
          %672 = vmax.xlane.f32.xlu0 %v671
          %v673 = vpop.xlane.xlu0 %672
          %v674 = vsel %vm649, %v611, -inf
          %675 = vmax.xlane.f32.xlu0 %v674
          %v676 = vpop.xlane.xlu0 %675
          %v677 = vsel %vm649, %v616, -inf
          %678 = vmax.xlane.f32.xlu0 %v677
          %v679 = vpop.xlane.xlu0 %678
          %v680 = vsel %vm649, %v621, -inf
          %681 = vmax.xlane.f32.xlu0 %v680
          %v682 = vpop.xlane.xlu0 %681
          %v683 = vsel %vm649, %v626, -inf
          %684 = vmax.xlane.f32.xlu0 %v683
          %v685 = vpop.xlane.xlu0 %684
          %v686 = vsel %vm649, %v631, -inf
          %687 = vmax.xlane.f32.xlu0 %v686
          %v688 = vpop.xlane.xlu0 %687
          %v689 = vsel %vm649, %v636, -inf
          %690 = vmax.xlane.f32.xlu0 %v689
          %v691 = vpop.xlane.xlu0 %690
          %v692 = vsel %vm649, %v641, -inf
          %693 = vmax.xlane.f32.xlu0 %v692
          %v694 = vpop.xlane.xlu0 %693
          %v695 = vsel %vm649, %v646, -inf
          %696 = vmax.xlane.f32.xlu0 %v695
          %v697 = vpop.xlane.xlu0 %696
          %v698 = vsub.f32 %v571, %v652
          %v699 = vsub.f32 %v576, %v655
          %v700 = vsub.f32 %v581, %v658
          %v701 = vsub.f32 %v586, %v661
          %v702 = vsub.f32 %v591, %v664
          %v703 = vsub.f32 %v596, %v667
          %v704 = vsub.f32 %v601, %v670
          %v705 = vsub.f32 %v606, %v673
          %v706 = vsub.f32 %v611, %v676
          %v707 = vsub.f32 %v616, %v679
          %v708 = vsub.f32 %v621, %v682
          %v709 = vsub.f32 %v626, %v685
          %v710 = vsub.f32 %v631, %v688
          %v711 = vsub.f32 %v636, %v691
          %v712 = vsub.f32 %v641, %v694
          %v713 = vsub.f32 %v646, %v697
          %v714 = vmul.f32 %v698, 1.442695
          %v715 = vpow.pop %v714
          %v716 = vmul.f32 %v699, 1.442695
          %v717 = vpow.pop %v716
          %v718 = vmul.f32 %v700, 1.442695
          %v719 = vpow.pop %v718
          %v720 = vmul.f32 %v701, 1.442695
          %v721 = vpow.pop %v720
          %v722 = vmul.f32 %v702, 1.442695
          %v723 = vpow.pop %v722
          %v724 = vmul.f32 %v703, 1.442695
          %v725 = vpow.pop %v724
          %v726 = vmul.f32 %v704, 1.442695
          %v727 = vpow.pop %v726
          %v728 = vmul.f32 %v705, 1.442695
          %v729 = vpow.pop %v728
          %v730 = vmul.f32 %v706, 1.442695
          %v731 = vpow.pop %v730
          %v732 = vmul.f32 %v707, 1.442695
          %v733 = vpow.pop %v732
          %v734 = vmul.f32 %v708, 1.442695
          %v735 = vpow.pop %v734
          %v736 = vmul.f32 %v709, 1.442695
          %v737 = vpow.pop %v736
          %v738 = vmul.f32 %v710, 1.442695
          %v739 = vpow.pop %v738
          %v740 = vmul.f32 %v711, 1.442695
          %v741 = vpow.pop %v740
          %v742 = vmul.f32 %v712, 1.442695
          %v743 = vpow.pop %v742
          %v744 = vmul.f32 %v713, 1.442695
          %v745 = vpow.pop %v744
          %v746 = vsel %vm649, %v715, 0.0
          %747 = vadd.xlane.f32.xlu0 %v746
          %v748 = vpop.xlane.xlu0 %747
          %v749 = vsel %vm649, %v717, 0.0
          %750 = vadd.xlane.f32.xlu0 %v749
          %v751 = vpop.xlane.xlu0 %750
          %v752 = vsel %vm649, %v719, 0.0
          %753 = vadd.xlane.f32.xlu0 %v752
          %v754 = vpop.xlane.xlu0 %753
          %v755 = vsel %vm649, %v721, 0.0
          %756 = vadd.xlane.f32.xlu0 %v755
          %v757 = vpop.xlane.xlu0 %756
          %v758 = vsel %vm649, %v723, 0.0
          %759 = vadd.xlane.f32.xlu0 %v758
          %v760 = vpop.xlane.xlu0 %759
          %v761 = vsel %vm649, %v725, 0.0
          %762 = vadd.xlane.f32.xlu0 %v761
          %v763 = vpop.xlane.xlu0 %762
          %v764 = vsel %vm649, %v727, 0.0
          %765 = vadd.xlane.f32.xlu0 %v764
          %v766 = vpop.xlane.xlu0 %765
          %v767 = vsel %vm649, %v729, 0.0
          %768 = vadd.xlane.f32.xlu0 %v767
          %v769 = vpop.xlane.xlu0 %768
          %v770 = vsel %vm649, %v731, 0.0
          %771 = vadd.xlane.f32.xlu0 %v770
          %v772 = vpop.xlane.xlu0 %771
          %v773 = vsel %vm649, %v733, 0.0
          %774 = vadd.xlane.f32.xlu0 %v773
          %v775 = vpop.xlane.xlu0 %774
          %v776 = vsel %vm649, %v735, 0.0
          %777 = vadd.xlane.f32.xlu0 %v776
          %v778 = vpop.xlane.xlu0 %777
          %v779 = vsel %vm649, %v737, 0.0
          %780 = vadd.xlane.f32.xlu0 %v779
          %v781 = vpop.xlane.xlu0 %780
          %v782 = vsel %vm649, %v739, 0.0
          %783 = vadd.xlane.f32.xlu0 %v782
          %v784 = vpop.xlane.xlu0 %783
          %v785 = vsel %vm649, %v741, 0.0
          %786 = vadd.xlane.f32.xlu0 %v785
          %v787 = vpop.xlane.xlu0 %786
          %v788 = vsel %vm649, %v743, 0.0
          %789 = vadd.xlane.f32.xlu0 %v788
          %v790 = vpop.xlane.xlu0 %789
          %v791 = vsel %vm649, %v745, 0.0
          %792 = vadd.xlane.f32.xlu0 %v791
          %v793 = vpop.xlane.xlu0 %792
          %v794 = vrcp.pop %v748
          %v795 = vmul.f32 %v715, %v794
          %v796 = vrcp.pop %v751
          %v797 = vmul.f32 %v717, %v796
          %v798 = vrcp.pop %v754
          %v799 = vmul.f32 %v719, %v798
          %v800 = vrcp.pop %v757
          %v801 = vmul.f32 %v721, %v800
          %v802 = vrcp.pop %v760
          %v803 = vmul.f32 %v723, %v802
          %v804 = vrcp.pop %v763
          %v805 = vmul.f32 %v725, %v804
          %v806 = vrcp.pop %v766
          %v807 = vmul.f32 %v727, %v806
          %v808 = vrcp.pop %v769
          %v809 = vmul.f32 %v729, %v808
          %v810 = vrcp.pop %v772
          %v811 = vmul.f32 %v731, %v810
          %v812 = vrcp.pop %v775
          %v813 = vmul.f32 %v733, %v812
          %v814 = vrcp.pop %v778
          %v815 = vmul.f32 %v735, %v814
          %v816 = vrcp.pop %v781
          %v817 = vmul.f32 %v737, %v816
          %v818 = vrcp.pop %v784
          %v819 = vmul.f32 %v739, %v818
          %v820 = vrcp.pop %v787
          %v821 = vmul.f32 %v741, %v820
          %v822 = vrcp.pop %v790
          %v823 = vmul.f32 %v743, %v822
          %v824 = vrcp.pop %v793
          %v825 = vmul.f32 %v745, %v824
          %v826 = vlaneseq
          %v827 = vand.u32 %v826, 127
          %v828 = vsel %vm649, %v795, -inf
          %829 = vmax.xlane.f32.xlu0 %v828
          %v830 = vpop.xlane.xlu0 %829
          %v831 = vsel %vm649, %v797, -inf
          %832 = vmax.xlane.f32.xlu0 %v831
          %v833 = vpop.xlane.xlu0 %832
          %v834 = vsel %vm649, %v799, -inf
          %835 = vmax.xlane.f32.xlu0 %v834
          %v836 = vpop.xlane.xlu0 %835
          %v837 = vsel %vm649, %v801, -inf
          %838 = vmax.xlane.f32.xlu0 %v837
          %v839 = vpop.xlane.xlu0 %838
          %v840 = vsel %vm649, %v803, -inf
          %841 = vmax.xlane.f32.xlu0 %v840
          %v842 = vpop.xlane.xlu0 %841
          %v843 = vsel %vm649, %v805, -inf
          %844 = vmax.xlane.f32.xlu0 %v843
          %v845 = vpop.xlane.xlu0 %844
          %v846 = vsel %vm649, %v807, -inf
          %847 = vmax.xlane.f32.xlu0 %v846
          %v848 = vpop.xlane.xlu0 %847
          %v849 = vsel %vm649, %v809, -inf
          %850 = vmax.xlane.f32.xlu0 %v849
          %v851 = vpop.xlane.xlu0 %850
          %v852 = vsel %vm649, %v811, -inf
          %853 = vmax.xlane.f32.xlu0 %v852
          %v854 = vpop.xlane.xlu0 %853
          %v855 = vsel %vm649, %v813, -inf
          %856 = vmax.xlane.f32.xlu0 %v855
          %v857 = vpop.xlane.xlu0 %856
          %v858 = vsel %vm649, %v815, -inf
          %859 = vmax.xlane.f32.xlu0 %v858
          %v860 = vpop.xlane.xlu0 %859
          %v861 = vsel %vm649, %v817, -inf
          %862 = vmax.xlane.f32.xlu0 %v861
          %v863 = vpop.xlane.xlu0 %862
          %v864 = vsel %vm649, %v819, -inf
          %865 = vmax.xlane.f32.xlu0 %v864
          %v866 = vpop.xlane.xlu0 %865
          %v867 = vsel %vm649, %v821, -inf
          %868 = vmax.xlane.f32.xlu0 %v867
          %v869 = vpop.xlane.xlu0 %868
          %v870 = vsel %vm649, %v823, -inf
          %871 = vmax.xlane.f32.xlu0 %v870
          %v872 = vpop.xlane.xlu0 %871
          %v873 = vsel %vm649, %v825, -inf
          %874 = vmax.xlane.f32.xlu0 %v873
          %v875 = vpop.xlane.xlu0 %874
          %vm876 = vcmp.eq.f32.partialorder %v795, %v830
          %vm877 = vcmp.eq.f32.partialorder %v797, %v833
          %vm878 = vcmp.eq.f32.partialorder %v799, %v836
          %vm879 = vcmp.eq.f32.partialorder %v801, %v839
          %vm880 = vcmp.eq.f32.partialorder %v803, %v842
          %vm881 = vcmp.eq.f32.partialorder %v805, %v845
          %vm882 = vcmp.eq.f32.partialorder %v807, %v848
          %vm883 = vcmp.eq.f32.partialorder %v809, %v851
          %vm884 = vcmp.eq.f32.partialorder %v811, %v854
          %vm885 = vcmp.eq.f32.partialorder %v813, %v857
          %vm886 = vcmp.eq.f32.partialorder %v815, %v860
          %vm887 = vcmp.eq.f32.partialorder %v817, %v863
          %vm888 = vcmp.eq.f32.partialorder %v819, %v866
          %vm889 = vcmp.eq.f32.partialorder %v821, %v869
          %vm890 = vcmp.eq.f32.partialorder %v823, %v872
          %vm891 = vcmp.eq.f32.partialorder %v825, %v875
          %v892 = vsel %vm876, %v827, 4
          %v893 = vsel %vm877, %v827, 4
          %v894 = vsel %vm878, %v827, 4
          %v895 = vsel %vm879, %v827, 4
          %v896 = vsel %vm880, %v827, 4
          %v897 = vsel %vm881, %v827, 4
          %v898 = vsel %vm882, %v827, 4
          %v899 = vsel %vm883, %v827, 4
          %v900 = vsel %vm884, %v827, 4
          %v901 = vsel %vm885, %v827, 4
          %v902 = vsel %vm886, %v827, 4
          %v903 = vsel %vm887, %v827, 4
          %v904 = vsel %vm888, %v827, 4
          %v905 = vsel %vm889, %v827, 4
          %v906 = vsel %vm890, %v827, 4
          %v907 = vsel %vm891, %v827, 4
          %v908 = vsel %vm649, %v892, 2147483647
          %v909 = vand.u32 %v908, 65535
          %v910 = vshra.s32 %v908, 16
          %v911 = vcvt.s32.f32 %v909
          %v912 = vcvt.s32.f32 %v910
          %913 = vmin.xlane.f32.xlu0 %v912
          %v914 = vpop.xlane.xlu0 %913
          %vm915 = vcmp.eq.f32.partialorder %v912, %v914
          %v916 = vsel %vm915, %v911, inf
          %917 = vmin.xlane.f32.xlu0 %v916
          %v918 = vpop.xlane.xlu0 %917
          %v919 = vcvt.f32.s32 %v918
          %v920 = vcvt.f32.s32 %v914
          %v921 = vshll.u32 %v920, 16
          %v922 = vadd.s32 %v921, %v919
          %v923 = vsel %vm649, %v893, 2147483647
          %v924 = vand.u32 %v923, 65535
          %v925 = vshra.s32 %v923, 16
          %v926 = vcvt.s32.f32 %v924
          %v927 = vcvt.s32.f32 %v925
          %928 = vmin.xlane.f32.xlu0 %v927
          %v929 = vpop.xlane.xlu0 %928
          %vm930 = vcmp.eq.f32.partialorder %v927, %v929
          %v931 = vsel %vm930, %v926, inf
          %932 = vmin.xlane.f32.xlu0 %v931
          %v933 = vpop.xlane.xlu0 %932
          %v934 = vcvt.f32.s32 %v933
          %v935 = vcvt.f32.s32 %v929
          %v936 = vshll.u32 %v935, 16
          %v937 = vadd.s32 %v936, %v934
          %v938 = vsel %vm649, %v894, 2147483647
          %v939 = vand.u32 %v938, 65535
          %v940 = vshra.s32 %v938, 16
          %v941 = vcvt.s32.f32 %v939
          %v942 = vcvt.s32.f32 %v940
          %943 = vmin.xlane.f32.xlu0 %v942
          %v944 = vpop.xlane.xlu0 %943
          %vm945 = vcmp.eq.f32.partialorder %v942, %v944
          %v946 = vsel %vm945, %v941, inf
          %947 = vmin.xlane.f32.xlu0 %v946
          %v948 = vpop.xlane.xlu0 %947
          %v949 = vcvt.f32.s32 %v948
          %v950 = vcvt.f32.s32 %v944
          %v951 = vshll.u32 %v950, 16
          %v952 = vadd.s32 %v951, %v949
          %v953 = vsel %vm649, %v895, 2147483647
          %v954 = vand.u32 %v953, 65535
          %v955 = vshra.s32 %v953, 16
          %v956 = vcvt.s32.f32 %v954
          %v957 = vcvt.s32.f32 %v955
          %958 = vmin.xlane.f32.xlu0 %v957
          %v959 = vpop.xlane.xlu0 %958
          %vm960 = vcmp.eq.f32.partialorder %v957, %v959
          %v961 = vsel %vm960, %v956, inf
          %962 = vmin.xlane.f32.xlu0 %v961
          %v963 = vpop.xlane.xlu0 %962
          %v964 = vcvt.f32.s32 %v963
          %v965 = vcvt.f32.s32 %v959
          %v966 = vshll.u32 %v965, 16
          %v967 = vadd.s32 %v966, %v964
          %v968 = vsel %vm649, %v896, 2147483647
          %v969 = vand.u32 %v968, 65535
          %v970 = vshra.s32 %v968, 16
          %v971 = vcvt.s32.f32 %v969
          %v972 = vcvt.s32.f32 %v970
          %973 = vmin.xlane.f32.xlu0 %v972
          %v974 = vpop.xlane.xlu0 %973
          %vm975 = vcmp.eq.f32.partialorder %v972, %v974
          %v976 = vsel %vm975, %v971, inf
          %977 = vmin.xlane.f32.xlu0 %v976
          %v978 = vpop.xlane.xlu0 %977
          %v979 = vcvt.f32.s32 %v978
          %v980 = vcvt.f32.s32 %v974
          %v981 = vshll.u32 %v980, 16
          %v982 = vadd.s32 %v981, %v979
          %v983 = vsel %vm649, %v897, 2147483647
          %v984 = vand.u32 %v983, 65535
          %v985 = vshra.s32 %v983, 16
          %v986 = vcvt.s32.f32 %v984
          %v987 = vcvt.s32.f32 %v985
          %988 = vmin.xlane.f32.xlu0 %v987
          %v989 = vpop.xlane.xlu0 %988
          %vm990 = vcmp.eq.f32.partialorder %v987, %v989
          %v991 = vsel %vm990, %v986, inf
          %992 = vmin.xlane.f32.xlu0 %v991
          %v993 = vpop.xlane.xlu0 %992
          %v994 = vcvt.f32.s32 %v993
          %v995 = vcvt.f32.s32 %v989
          %v996 = vshll.u32 %v995, 16
          %v997 = vadd.s32 %v996, %v994
          %v998 = vsel %vm649, %v898, 2147483647
          %v999 = vand.u32 %v998, 65535
          %v1000 = vshra.s32 %v998, 16
          %v1001 = vcvt.s32.f32 %v999
          %v1002 = vcvt.s32.f32 %v1000
          %1003 = vmin.xlane.f32.xlu0 %v1002
          %v1004 = vpop.xlane.xlu0 %1003
          %vm1005 = vcmp.eq.f32.partialorder %v1002, %v1004
          %v1006 = vsel %vm1005, %v1001, inf
          %1007 = vmin.xlane.f32.xlu0 %v1006
          %v1008 = vpop.xlane.xlu0 %1007
          %v1009 = vcvt.f32.s32 %v1008
          %v1010 = vcvt.f32.s32 %v1004
          %v1011 = vshll.u32 %v1010, 16
          %v1012 = vadd.s32 %v1011, %v1009
          %v1013 = vsel %vm649, %v899, 2147483647
          %v1014 = vand.u32 %v1013, 65535
          %v1015 = vshra.s32 %v1013, 16
          %v1016 = vcvt.s32.f32 %v1014
          %v1017 = vcvt.s32.f32 %v1015
          %1018 = vmin.xlane.f32.xlu0 %v1017
          %v1019 = vpop.xlane.xlu0 %1018
          %vm1020 = vcmp.eq.f32.partialorder %v1017, %v1019
          %v1021 = vsel %vm1020, %v1016, inf
          %1022 = vmin.xlane.f32.xlu0 %v1021
          %v1023 = vpop.xlane.xlu0 %1022
          %v1024 = vcvt.f32.s32 %v1023
          %v1025 = vcvt.f32.s32 %v1019
          %v1026 = vshll.u32 %v1025, 16
          %v1027 = vadd.s32 %v1026, %v1024
          %v1028 = vsel %vm649, %v900, 2147483647
          %v1029 = vand.u32 %v1028, 65535
          %v1030 = vshra.s32 %v1028, 16
          %v1031 = vcvt.s32.f32 %v1029
          %v1032 = vcvt.s32.f32 %v1030
          %1033 = vmin.xlane.f32.xlu0 %v1032
          %v1034 = vpop.xlane.xlu0 %1033
          %vm1035 = vcmp.eq.f32.partialorder %v1032, %v1034
          %v1036 = vsel %vm1035, %v1031, inf
          %1037 = vmin.xlane.f32.xlu0 %v1036
          %v1038 = vpop.xlane.xlu0 %1037
          %v1039 = vcvt.f32.s32 %v1038
          %v1040 = vcvt.f32.s32 %v1034
          %v1041 = vshll.u32 %v1040, 16
          %v1042 = vadd.s32 %v1041, %v1039
          %v1043 = vsel %vm649, %v901, 2147483647
          %v1044 = vand.u32 %v1043, 65535
          %v1045 = vshra.s32 %v1043, 16
          %v1046 = vcvt.s32.f32 %v1044
          %v1047 = vcvt.s32.f32 %v1045
          %1048 = vmin.xlane.f32.xlu0 %v1047
          %v1049 = vpop.xlane.xlu0 %1048
          %vm1050 = vcmp.eq.f32.partialorder %v1047, %v1049
          %v1051 = vsel %vm1050, %v1046, inf
          %1052 = vmin.xlane.f32.xlu0 %v1051
          %v1053 = vpop.xlane.xlu0 %1052
          %v1054 = vcvt.f32.s32 %v1053
          %v1055 = vcvt.f32.s32 %v1049
          %v1056 = vshll.u32 %v1055, 16
          %v1057 = vadd.s32 %v1056, %v1054
          %v1058 = vsel %vm649, %v902, 2147483647
          %v1059 = vand.u32 %v1058, 65535
          %v1060 = vshra.s32 %v1058, 16
          %v1061 = vcvt.s32.f32 %v1059
          %v1062 = vcvt.s32.f32 %v1060
          %1063 = vmin.xlane.f32.xlu0 %v1062
          %v1064 = vpop.xlane.xlu0 %1063
          %vm1065 = vcmp.eq.f32.partialorder %v1062, %v1064
          %v1066 = vsel %vm1065, %v1061, inf
          %1067 = vmin.xlane.f32.xlu0 %v1066
          %v1068 = vpop.xlane.xlu0 %1067
          %v1069 = vcvt.f32.s32 %v1068
          %v1070 = vcvt.f32.s32 %v1064
          %v1071 = vshll.u32 %v1070, 16
          %v1072 = vadd.s32 %v1071, %v1069
          %v1073 = vsel %vm649, %v903, 2147483647
          %v1074 = vand.u32 %v1073, 65535
          %v1075 = vshra.s32 %v1073, 16
          %v1076 = vcvt.s32.f32 %v1074
          %v1077 = vcvt.s32.f32 %v1075
          %1078 = vmin.xlane.f32.xlu0 %v1077
          %v1079 = vpop.xlane.xlu0 %1078
          %vm1080 = vcmp.eq.f32.partialorder %v1077, %v1079
          %v1081 = vsel %vm1080, %v1076, inf
          %1082 = vmin.xlane.f32.xlu0 %v1081
          %v1083 = vpop.xlane.xlu0 %1082
          %v1084 = vcvt.f32.s32 %v1083
          %v1085 = vcvt.f32.s32 %v1079
          %v1086 = vshll.u32 %v1085, 16
          %v1087 = vadd.s32 %v1086, %v1084
          %v1088 = vsel %vm649, %v904, 2147483647
          %v1089 = vand.u32 %v1088, 65535
          %v1090 = vshra.s32 %v1088, 16
          %v1091 = vcvt.s32.f32 %v1089
          %v1092 = vcvt.s32.f32 %v1090
          %1093 = vmin.xlane.f32.xlu0 %v1092
          %v1094 = vpop.xlane.xlu0 %1093
          %vm1095 = vcmp.eq.f32.partialorder %v1092, %v1094
          %v1096 = vsel %vm1095, %v1091, inf
          %1097 = vmin.xlane.f32.xlu0 %v1096
          %v1098 = vpop.xlane.xlu0 %1097
          %v1099 = vcvt.f32.s32 %v1098
          %v1100 = vcvt.f32.s32 %v1094
          %v1101 = vshll.u32 %v1100, 16
          %v1102 = vadd.s32 %v1101, %v1099
          %v1103 = vsel %vm649, %v905, 2147483647
          %v1104 = vand.u32 %v1103, 65535
          %v1105 = vshra.s32 %v1103, 16
          %v1106 = vcvt.s32.f32 %v1104
          %v1107 = vcvt.s32.f32 %v1105
          %1108 = vmin.xlane.f32.xlu0 %v1107
          %v1109 = vpop.xlane.xlu0 %1108
          %vm1110 = vcmp.eq.f32.partialorder %v1107, %v1109
          %v1111 = vsel %vm1110, %v1106, inf
          %1112 = vmin.xlane.f32.xlu0 %v1111
          %v1113 = vpop.xlane.xlu0 %1112
          %v1114 = vcvt.f32.s32 %v1113
          %v1115 = vcvt.f32.s32 %v1109
          %v1116 = vshll.u32 %v1115, 16
          %v1117 = vadd.s32 %v1116, %v1114
          %v1118 = vsel %vm649, %v906, 2147483647
          %v1119 = vand.u32 %v1118, 65535
          %v1120 = vshra.s32 %v1118, 16
          %v1121 = vcvt.s32.f32 %v1119
          %v1122 = vcvt.s32.f32 %v1120
          %1123 = vmin.xlane.f32.xlu0 %v1122
          %v1124 = vpop.xlane.xlu0 %1123
          %vm1125 = vcmp.eq.f32.partialorder %v1122, %v1124
          %v1126 = vsel %vm1125, %v1121, inf
          %1127 = vmin.xlane.f32.xlu0 %v1126
          %v1128 = vpop.xlane.xlu0 %1127
          %v1129 = vcvt.f32.s32 %v1128
          %v1130 = vcvt.f32.s32 %v1124
          %v1131 = vshll.u32 %v1130, 16
          %v1132 = vadd.s32 %v1131, %v1129
          %v1133 = vsel %vm649, %v907, 2147483647
          %v1134 = vand.u32 %v1133, 65535
          %v1135 = vshra.s32 %v1133, 16
          %v1136 = vcvt.s32.f32 %v1134
          %v1137 = vcvt.s32.f32 %v1135
          %1138 = vmin.xlane.f32.xlu0 %v1137
          %v1139 = vpop.xlane.xlu0 %1138
          %vm1140 = vcmp.eq.f32.partialorder %v1137, %v1139
          %v1141 = vsel %vm1140, %v1136, inf
          %1142 = vmin.xlane.f32.xlu0 %v1141
          %v1143 = vpop.xlane.xlu0 %1142
          %v1144 = vcvt.f32.s32 %v1143
          %v1145 = vcvt.f32.s32 %v1139
          %v1146 = vshll.u32 %v1145, 16
          %v1147 = vadd.s32 %v1146, %v1144
          %vm1148 = vcmp.eq.s32.totalorder %v827, %v922
          %vm1149 = vcmp.eq.s32.totalorder %v827, %v937
          %vm1150 = vcmp.eq.s32.totalorder %v827, %v952
          %vm1151 = vcmp.eq.s32.totalorder %v827, %v967
          %vm1152 = vcmp.eq.s32.totalorder %v827, %v982
          %vm1153 = vcmp.eq.s32.totalorder %v827, %v997
          %vm1154 = vcmp.eq.s32.totalorder %v827, %v1012
          %vm1155 = vcmp.eq.s32.totalorder %v827, %v1027
          %vm1156 = vcmp.eq.s32.totalorder %v827, %v1042
          %vm1157 = vcmp.eq.s32.totalorder %v827, %v1057
          %vm1158 = vcmp.eq.s32.totalorder %v827, %v1072
          %vm1159 = vcmp.eq.s32.totalorder %v827, %v1087
          %vm1160 = vcmp.eq.s32.totalorder %v827, %v1102
          %vm1161 = vcmp.eq.s32.totalorder %v827, %v1117
          %vm1162 = vcmp.eq.s32.totalorder %v827, %v1132
          %vm1163 = vcmp.eq.s32.totalorder %v827, %v1147
          %v1164 = vsel %vm1148, -inf, %v795
          %v1165 = vsel %vm1149, -inf, %v797
          %v1166 = vsel %vm1150, -inf, %v799
          %v1167 = vsel %vm1151, -inf, %v801
          %v1168 = vsel %vm1152, -inf, %v803
          %v1169 = vsel %vm1153, -inf, %v805
          %v1170 = vsel %vm1154, -inf, %v807
          %v1171 = vsel %vm1155, -inf, %v809
          %v1172 = vsel %vm1156, -inf, %v811
          %v1173 = vsel %vm1157, -inf, %v813
          %v1174 = vsel %vm1158, -inf, %v815
          %v1175 = vsel %vm1159, -inf, %v817
          %v1176 = vsel %vm1160, -inf, %v819
          %v1177 = vsel %vm1161, -inf, %v821
          %v1178 = vsel %vm1162, -inf, %v823
          %v1179 = vsel %vm1163, -inf, %v825
          %v1180 = vsel %vm649, %v1164, -inf
          %1181 = vmax.xlane.f32.xlu0 %v1180
          %v1182 = vpop.xlane.xlu0 %1181
          %v1183 = vsel %vm649, %v1165, -inf
          %1184 = vmax.xlane.f32.xlu0 %v1183
          %v1185 = vpop.xlane.xlu0 %1184
          %v1186 = vsel %vm649, %v1166, -inf
          %1187 = vmax.xlane.f32.xlu0 %v1186
          %v1188 = vpop.xlane.xlu0 %1187
          %v1189 = vsel %vm649, %v1167, -inf
          %1190 = vmax.xlane.f32.xlu0 %v1189
          %v1191 = vpop.xlane.xlu0 %1190
          %v1192 = vsel %vm649, %v1168, -inf
          %1193 = vmax.xlane.f32.xlu0 %v1192
          %v1194 = vpop.xlane.xlu0 %1193
          %v1195 = vsel %vm649, %v1169, -inf
          %1196 = vmax.xlane.f32.xlu0 %v1195
          %v1197 = vpop.xlane.xlu0 %1196
          %v1198 = vsel %vm649, %v1170, -inf
          %1199 = vmax.xlane.f32.xlu0 %v1198
          %v1200 = vpop.xlane.xlu0 %1199
          %v1201 = vsel %vm649, %v1171, -inf
          %1202 = vmax.xlane.f32.xlu0 %v1201
          %v1203 = vpop.xlane.xlu0 %1202
          %v1204 = vsel %vm649, %v1172, -inf
          %1205 = vmax.xlane.f32.xlu0 %v1204
          %v1206 = vpop.xlane.xlu0 %1205
          %v1207 = vsel %vm649, %v1173, -inf
          %1208 = vmax.xlane.f32.xlu0 %v1207
          %v1209 = vpop.xlane.xlu0 %1208
          %v1210 = vsel %vm649, %v1174, -inf
          %1211 = vmax.xlane.f32.xlu0 %v1210
          %v1212 = vpop.xlane.xlu0 %1211
          %v1213 = vsel %vm649, %v1175, -inf
          %1214 = vmax.xlane.f32.xlu0 %v1213
          %v1215 = vpop.xlane.xlu0 %1214
          %v1216 = vsel %vm649, %v1176, -inf
          %1217 = vmax.xlane.f32.xlu0 %v1216
          %v1218 = vpop.xlane.xlu0 %1217
          %v1219 = vsel %vm649, %v1177, -inf
          %1220 = vmax.xlane.f32.xlu0 %v1219
          %v1221 = vpop.xlane.xlu0 %1220
          %v1222 = vsel %vm649, %v1178, -inf
          %1223 = vmax.xlane.f32.xlu0 %v1222
          %v1224 = vpop.xlane.xlu0 %1223
          %v1225 = vsel %vm649, %v1179, -inf
          %1226 = vmax.xlane.f32.xlu0 %v1225
          %v1227 = vpop.xlane.xlu0 %1226
          %vm1228 = vcmp.eq.f32.partialorder %v1164, %v1182
          %vm1229 = vcmp.eq.f32.partialorder %v1165, %v1185
          %vm1230 = vcmp.eq.f32.partialorder %v1166, %v1188
          %vm1231 = vcmp.eq.f32.partialorder %v1167, %v1191
          %vm1232 = vcmp.eq.f32.partialorder %v1168, %v1194
          %vm1233 = vcmp.eq.f32.partialorder %v1169, %v1197
          %vm1234 = vcmp.eq.f32.partialorder %v1170, %v1200
          %vm1235 = vcmp.eq.f32.partialorder %v1171, %v1203
          %vm1236 = vcmp.eq.f32.partialorder %v1172, %v1206
          %vm1237 = vcmp.eq.f32.partialorder %v1173, %v1209
          %vm1238 = vcmp.eq.f32.partialorder %v1174, %v1212
          %vm1239 = vcmp.eq.f32.partialorder %v1175, %v1215
          %vm1240 = vcmp.eq.f32.partialorder %v1176, %v1218
          %vm1241 = vcmp.eq.f32.partialorder %v1177, %v1221
          %vm1242 = vcmp.eq.f32.partialorder %v1178, %v1224
          %vm1243 = vcmp.eq.f32.partialorder %v1179, %v1227
          %v1244 = vsel %vm1228, %v827, 4
          %v1245 = vsel %vm1229, %v827, 4
          %v1246 = vsel %vm1230, %v827, 4
          %v1247 = vsel %vm1231, %v827, 4
          %v1248 = vsel %vm1232, %v827, 4
          %v1249 = vsel %vm1233, %v827, 4
          %v1250 = vsel %vm1234, %v827, 4
          %v1251 = vsel %vm1235, %v827, 4
          %v1252 = vsel %vm1236, %v827, 4
          %v1253 = vsel %vm1237, %v827, 4
          %v1254 = vsel %vm1238, %v827, 4
          %v1255 = vsel %vm1239, %v827, 4
          %v1256 = vsel %vm1240, %v827, 4
          %v1257 = vsel %vm1241, %v827, 4
          %v1258 = vsel %vm1242, %v827, 4
          %v1259 = vsel %vm1243, %v827, 4
          %v1260 = vsel %vm649, %v1244, 2147483647
          %v1261 = vand.u32 %v1260, 65535
          %v1262 = vshra.s32 %v1260, 16
          %v1263 = vcvt.s32.f32 %v1261
          %v1264 = vcvt.s32.f32 %v1262
          %1265 = vmin.xlane.f32.xlu0 %v1264
          %v1266 = vpop.xlane.xlu0 %1265
          %vm1267 = vcmp.eq.f32.partialorder %v1264, %v1266
          %v1268 = vsel %vm1267, %v1263, inf
          %1269 = vmin.xlane.f32.xlu0 %v1268
          %v1270 = vpop.xlane.xlu0 %1269
          %v1271 = vcvt.f32.s32 %v1270
          %v1272 = vcvt.f32.s32 %v1266
          %v1273 = vshll.u32 %v1272, 16
          %v1274 = vadd.s32 %v1273, %v1271
          %v1275 = vsel %vm649, %v1245, 2147483647
          %v1276 = vand.u32 %v1275, 65535
          %v1277 = vshra.s32 %v1275, 16
          %v1278 = vcvt.s32.f32 %v1276
          %v1279 = vcvt.s32.f32 %v1277
          %1280 = vmin.xlane.f32.xlu0 %v1279
          %v1281 = vpop.xlane.xlu0 %1280
          %vm1282 = vcmp.eq.f32.partialorder %v1279, %v1281
          %v1283 = vsel %vm1282, %v1278, inf
          %1284 = vmin.xlane.f32.xlu0 %v1283
          %v1285 = vpop.xlane.xlu0 %1284
          %v1286 = vcvt.f32.s32 %v1285
          %v1287 = vcvt.f32.s32 %v1281
          %v1288 = vshll.u32 %v1287, 16
          %v1289 = vadd.s32 %v1288, %v1286
          %v1290 = vsel %vm649, %v1246, 2147483647
          %v1291 = vand.u32 %v1290, 65535
          %v1292 = vshra.s32 %v1290, 16
          %v1293 = vcvt.s32.f32 %v1291
          %v1294 = vcvt.s32.f32 %v1292
          %1295 = vmin.xlane.f32.xlu0 %v1294
          %v1296 = vpop.xlane.xlu0 %1295
          %vm1297 = vcmp.eq.f32.partialorder %v1294, %v1296
          %v1298 = vsel %vm1297, %v1293, inf
          %1299 = vmin.xlane.f32.xlu0 %v1298
          %v1300 = vpop.xlane.xlu0 %1299
          %v1301 = vcvt.f32.s32 %v1300
          %v1302 = vcvt.f32.s32 %v1296
          %v1303 = vshll.u32 %v1302, 16
          %v1304 = vadd.s32 %v1303, %v1301
          %v1305 = vsel %vm649, %v1247, 2147483647
          %v1306 = vand.u32 %v1305, 65535
          %v1307 = vshra.s32 %v1305, 16
          %v1308 = vcvt.s32.f32 %v1306
          %v1309 = vcvt.s32.f32 %v1307
          %1310 = vmin.xlane.f32.xlu0 %v1309
          %v1311 = vpop.xlane.xlu0 %1310
          %vm1312 = vcmp.eq.f32.partialorder %v1309, %v1311
          %v1313 = vsel %vm1312, %v1308, inf
          %1314 = vmin.xlane.f32.xlu0 %v1313
          %v1315 = vpop.xlane.xlu0 %1314
          %v1316 = vcvt.f32.s32 %v1315
          %v1317 = vcvt.f32.s32 %v1311
          %v1318 = vshll.u32 %v1317, 16
          %v1319 = vadd.s32 %v1318, %v1316
          %v1320 = vsel %vm649, %v1248, 2147483647
          %v1321 = vand.u32 %v1320, 65535
          %v1322 = vshra.s32 %v1320, 16
          %v1323 = vcvt.s32.f32 %v1321
          %v1324 = vcvt.s32.f32 %v1322
          %1325 = vmin.xlane.f32.xlu0 %v1324
          %v1326 = vpop.xlane.xlu0 %1325
          %vm1327 = vcmp.eq.f32.partialorder %v1324, %v1326
          %v1328 = vsel %vm1327, %v1323, inf
          %1329 = vmin.xlane.f32.xlu0 %v1328
          %v1330 = vpop.xlane.xlu0 %1329
          %v1331 = vcvt.f32.s32 %v1330
          %v1332 = vcvt.f32.s32 %v1326
          %v1333 = vshll.u32 %v1332, 16
          %v1334 = vadd.s32 %v1333, %v1331
          %v1335 = vsel %vm649, %v1249, 2147483647
          %v1336 = vand.u32 %v1335, 65535
          %v1337 = vshra.s32 %v1335, 16
          %v1338 = vcvt.s32.f32 %v1336
          %v1339 = vcvt.s32.f32 %v1337
          %1340 = vmin.xlane.f32.xlu0 %v1339
          %v1341 = vpop.xlane.xlu0 %1340
          %vm1342 = vcmp.eq.f32.partialorder %v1339, %v1341
          %v1343 = vsel %vm1342, %v1338, inf
          %1344 = vmin.xlane.f32.xlu0 %v1343
          %v1345 = vpop.xlane.xlu0 %1344
          %v1346 = vcvt.f32.s32 %v1345
          %v1347 = vcvt.f32.s32 %v1341
          %v1348 = vshll.u32 %v1347, 16
          %v1349 = vadd.s32 %v1348, %v1346
          %v1350 = vsel %vm649, %v1250, 2147483647
          %v1351 = vand.u32 %v1350, 65535
          %v1352 = vshra.s32 %v1350, 16
          %v1353 = vcvt.s32.f32 %v1351
          %v1354 = vcvt.s32.f32 %v1352
          %1355 = vmin.xlane.f32.xlu0 %v1354
          %v1356 = vpop.xlane.xlu0 %1355
          %vm1357 = vcmp.eq.f32.partialorder %v1354, %v1356
          %v1358 = vsel %vm1357, %v1353, inf
          %1359 = vmin.xlane.f32.xlu0 %v1358
          %v1360 = vpop.xlane.xlu0 %1359
          %v1361 = vcvt.f32.s32 %v1360
          %v1362 = vcvt.f32.s32 %v1356
          %v1363 = vshll.u32 %v1362, 16
          %v1364 = vadd.s32 %v1363, %v1361
          %v1365 = vsel %vm649, %v1251, 2147483647
          %v1366 = vand.u32 %v1365, 65535
          %v1367 = vshra.s32 %v1365, 16
          %v1368 = vcvt.s32.f32 %v1366
          %v1369 = vcvt.s32.f32 %v1367
          %1370 = vmin.xlane.f32.xlu0 %v1369
          %v1371 = vpop.xlane.xlu0 %1370
          %vm1372 = vcmp.eq.f32.partialorder %v1369, %v1371
          %v1373 = vsel %vm1372, %v1368, inf
          %1374 = vmin.xlane.f32.xlu0 %v1373
          %v1375 = vpop.xlane.xlu0 %1374
          %v1376 = vcvt.f32.s32 %v1375
          %v1377 = vcvt.f32.s32 %v1371
          %v1378 = vshll.u32 %v1377, 16
          %v1379 = vadd.s32 %v1378, %v1376
          %v1380 = vsel %vm649, %v1252, 2147483647
          %v1381 = vand.u32 %v1380, 65535
          %v1382 = vshra.s32 %v1380, 16
          %v1383 = vcvt.s32.f32 %v1381
          %v1384 = vcvt.s32.f32 %v1382
          %1385 = vmin.xlane.f32.xlu0 %v1384
          %v1386 = vpop.xlane.xlu0 %1385
          %vm1387 = vcmp.eq.f32.partialorder %v1384, %v1386
          %v1388 = vsel %vm1387, %v1383, inf
          %1389 = vmin.xlane.f32.xlu0 %v1388
          %v1390 = vpop.xlane.xlu0 %1389
          %v1391 = vcvt.f32.s32 %v1390
          %v1392 = vcvt.f32.s32 %v1386
          %v1393 = vshll.u32 %v1392, 16
          %v1394 = vadd.s32 %v1393, %v1391
          %v1395 = vsel %vm649, %v1253, 2147483647
          %v1396 = vand.u32 %v1395, 65535
          %v1397 = vshra.s32 %v1395, 16
          %v1398 = vcvt.s32.f32 %v1396
          %v1399 = vcvt.s32.f32 %v1397
          %1400 = vmin.xlane.f32.xlu0 %v1399
          %v1401 = vpop.xlane.xlu0 %1400
          %vm1402 = vcmp.eq.f32.partialorder %v1399, %v1401
          %v1403 = vsel %vm1402, %v1398, inf
          %1404 = vmin.xlane.f32.xlu0 %v1403
          %v1405 = vpop.xlane.xlu0 %1404
          %v1406 = vcvt.f32.s32 %v1405
          %v1407 = vcvt.f32.s32 %v1401
          %v1408 = vshll.u32 %v1407, 16
          %v1409 = vadd.s32 %v1408, %v1406
          %v1410 = vsel %vm649, %v1254, 2147483647
          %v1411 = vand.u32 %v1410, 65535
          %v1412 = vshra.s32 %v1410, 16
          %v1413 = vcvt.s32.f32 %v1411
          %v1414 = vcvt.s32.f32 %v1412
          %1415 = vmin.xlane.f32.xlu0 %v1414
          %v1416 = vpop.xlane.xlu0 %1415
          %vm1417 = vcmp.eq.f32.partialorder %v1414, %v1416
          %v1418 = vsel %vm1417, %v1413, inf
          %1419 = vmin.xlane.f32.xlu0 %v1418
          %v1420 = vpop.xlane.xlu0 %1419
          %v1421 = vcvt.f32.s32 %v1420
          %v1422 = vcvt.f32.s32 %v1416
          %v1423 = vshll.u32 %v1422, 16
          %v1424 = vadd.s32 %v1423, %v1421
          %v1425 = vsel %vm649, %v1255, 2147483647
          %v1426 = vand.u32 %v1425, 65535
          %v1427 = vshra.s32 %v1425, 16
          %v1428 = vcvt.s32.f32 %v1426
          %v1429 = vcvt.s32.f32 %v1427
          %1430 = vmin.xlane.f32.xlu0 %v1429
          %v1431 = vpop.xlane.xlu0 %1430
          %vm1432 = vcmp.eq.f32.partialorder %v1429, %v1431
          %v1433 = vsel %vm1432, %v1428, inf
          %1434 = vmin.xlane.f32.xlu0 %v1433
          %v1435 = vpop.xlane.xlu0 %1434
          %v1436 = vcvt.f32.s32 %v1435
          %v1437 = vcvt.f32.s32 %v1431
          %v1438 = vshll.u32 %v1437, 16
          %v1439 = vadd.s32 %v1438, %v1436
          %v1440 = vsel %vm649, %v1256, 2147483647
          %v1441 = vand.u32 %v1440, 65535
          %v1442 = vshra.s32 %v1440, 16
          %v1443 = vcvt.s32.f32 %v1441
          %v1444 = vcvt.s32.f32 %v1442
          %1445 = vmin.xlane.f32.xlu0 %v1444
          %v1446 = vpop.xlane.xlu0 %1445
          %vm1447 = vcmp.eq.f32.partialorder %v1444, %v1446
          %v1448 = vsel %vm1447, %v1443, inf
          %1449 = vmin.xlane.f32.xlu0 %v1448
          %v1450 = vpop.xlane.xlu0 %1449
          %v1451 = vcvt.f32.s32 %v1450
          %v1452 = vcvt.f32.s32 %v1446
          %v1453 = vshll.u32 %v1452, 16
          %v1454 = vadd.s32 %v1453, %v1451
          %v1455 = vsel %vm649, %v1257, 2147483647
          %v1456 = vand.u32 %v1455, 65535
          %v1457 = vshra.s32 %v1455, 16
          %v1458 = vcvt.s32.f32 %v1456
          %v1459 = vcvt.s32.f32 %v1457
          %1460 = vmin.xlane.f32.xlu0 %v1459
          %v1461 = vpop.xlane.xlu0 %1460
          %vm1462 = vcmp.eq.f32.partialorder %v1459, %v1461
          %v1463 = vsel %vm1462, %v1458, inf
          %1464 = vmin.xlane.f32.xlu0 %v1463
          %v1465 = vpop.xlane.xlu0 %1464
          %v1466 = vcvt.f32.s32 %v1465
          %v1467 = vcvt.f32.s32 %v1461
          %v1468 = vshll.u32 %v1467, 16
          %v1469 = vadd.s32 %v1468, %v1466
          %v1470 = vsel %vm649, %v1258, 2147483647
          %v1471 = vand.u32 %v1470, 65535
          %v1472 = vshra.s32 %v1470, 16
          %v1473 = vcvt.s32.f32 %v1471
          %v1474 = vcvt.s32.f32 %v1472
          %1475 = vmin.xlane.f32.xlu0 %v1474
          %v1476 = vpop.xlane.xlu0 %1475
          %vm1477 = vcmp.eq.f32.partialorder %v1474, %v1476
          %v1478 = vsel %vm1477, %v1473, inf
          %1479 = vmin.xlane.f32.xlu0 %v1478
          %v1480 = vpop.xlane.xlu0 %1479
          %v1481 = vcvt.f32.s32 %v1480
          %v1482 = vcvt.f32.s32 %v1476
          %v1483 = vshll.u32 %v1482, 16
          %v1484 = vadd.s32 %v1483, %v1481
          %v1485 = vsel %vm649, %v1259, 2147483647
          %v1486 = vand.u32 %v1485, 65535
          %v1487 = vshra.s32 %v1485, 16
          %v1488 = vcvt.s32.f32 %v1486
          %v1489 = vcvt.s32.f32 %v1487
          %1490 = vmin.xlane.f32.xlu0 %v1489
          %v1491 = vpop.xlane.xlu0 %1490
          %vm1492 = vcmp.eq.f32.partialorder %v1489, %v1491
          %v1493 = vsel %vm1492, %v1488, inf
          %1494 = vmin.xlane.f32.xlu0 %v1493
          %v1495 = vpop.xlane.xlu0 %1494
          %v1496 = vcvt.f32.s32 %v1495
          %v1497 = vcvt.f32.s32 %v1491
          %v1498 = vshll.u32 %v1497, 16
          %v1499 = vadd.s32 %v1498, %v1496
          %vm1500 = vcmp.eq.s32.totalorder %v827, %v1274
          %vm1501 = vcmp.eq.s32.totalorder %v827, %v1289
          %vm1502 = vcmp.eq.s32.totalorder %v827, %v1304
          %vm1503 = vcmp.eq.s32.totalorder %v827, %v1319
          %vm1504 = vcmp.eq.s32.totalorder %v827, %v1334
          %vm1505 = vcmp.eq.s32.totalorder %v827, %v1349
          %vm1506 = vcmp.eq.s32.totalorder %v827, %v1364
          %vm1507 = vcmp.eq.s32.totalorder %v827, %v1379
          %vm1508 = vcmp.eq.s32.totalorder %v827, %v1394
          %vm1509 = vcmp.eq.s32.totalorder %v827, %v1409
          %vm1510 = vcmp.eq.s32.totalorder %v827, %v1424
          %vm1511 = vcmp.eq.s32.totalorder %v827, %v1439
          %vm1512 = vcmp.eq.s32.totalorder %v827, %v1454
          %vm1513 = vcmp.eq.s32.totalorder %v827, %v1469
          %vm1514 = vcmp.eq.s32.totalorder %v827, %v1484
          %vm1515 = vcmp.eq.s32.totalorder %v827, %v1499
          %vm1516 = vmor %vm1148, %vm1500
          %vm1517 = vmor %vm1149, %vm1501
          %vm1518 = vmor %vm1150, %vm1502
          %vm1519 = vmor %vm1151, %vm1503
          %vm1520 = vmor %vm1152, %vm1504
          %vm1521 = vmor %vm1153, %vm1505
          %vm1522 = vmor %vm1154, %vm1506
          %vm1523 = vmor %vm1155, %vm1507
          %vm1524 = vmor %vm1156, %vm1508
          %vm1525 = vmor %vm1157, %vm1509
          %vm1526 = vmor %vm1158, %vm1510
          %vm1527 = vmor %vm1159, %vm1511
          %vm1528 = vmor %vm1160, %vm1512
          %vm1529 = vmor %vm1161, %vm1513
          %vm1530 = vmor %vm1162, %vm1514
          %vm1531 = vmor %vm1163, %vm1515
          %v1532 = vsel %vm1516, %v795, 0.0
          %v1533 = vsel %vm1517, %v797, 0.0
          %v1534 = vsel %vm1518, %v799, 0.0
          %v1535 = vsel %vm1519, %v801, 0.0
          %v1536 = vsel %vm1520, %v803, 0.0
          %v1537 = vsel %vm1521, %v805, 0.0
          %v1538 = vsel %vm1522, %v807, 0.0
          %v1539 = vsel %vm1523, %v809, 0.0
          %v1540 = vsel %vm1524, %v811, 0.0
          %v1541 = vsel %vm1525, %v813, 0.0
          %v1542 = vsel %vm1526, %v815, 0.0
          %v1543 = vsel %vm1527, %v817, 0.0
          %v1544 = vsel %vm1528, %v819, 0.0
          %v1545 = vsel %vm1529, %v821, 0.0
          %v1546 = vsel %vm1530, %v823, 0.0
          %v1547 = vsel %vm1531, %v825, 0.0
          %1548 = vst.msk [vmem:[#allocation2] sm:$0xff] %vm649, %v1532
          %1549 = vst.msk [vmem:[#allocation2 + $0x8] sm:$0xff] %vm649, %v1533
          %1550 = vst.msk [vmem:[#allocation2 + $0x10] sm:$0xff] %vm649, %v1534
          %1551 = vst.msk [vmem:[#allocation2 + $0x18] sm:$0xff] %vm649, %v1535
          %1552 = vst.msk [vmem:[#allocation2 + $0x20] sm:$0xff] %vm649, %v1536
          %1553 = vst.msk [vmem:[#allocation2 + $0x28] sm:$0xff] %vm649, %v1537
          %1554 = vst.msk [vmem:[#allocation2 + $0x30] sm:$0xff] %vm649, %v1538
          %1555 = vst.msk [vmem:[#allocation2 + $0x38] sm:$0xff] %vm649, %v1539
          %1556 = vst.msk [vmem:[#allocation2 + $0x40] sm:$0xff] %vm649, %v1540
          %1557 = vst.msk [vmem:[#allocation2 + $0x48] sm:$0xff] %vm649, %v1541
          %1558 = vst.msk [vmem:[#allocation2 + $0x50] sm:$0xff] %vm649, %v1542
          %1559 = vst.msk [vmem:[#allocation2 + $0x58] sm:$0xff] %vm649, %v1543
          %1560 = vst.msk [vmem:[#allocation2 + $0x60] sm:$0xff] %vm649, %v1544
          %1561 = vst.msk [vmem:[#allocation2 + $0x68] sm:$0xff] %vm649, %v1545
          %1562 = vst.msk [vmem:[#allocation2 + $0x70] sm:$0xff] %vm649, %v1546
          %1563 = vst.msk [vmem:[#allocation2 + $0x78] sm:$0xff] %vm649, %v1547
          %v1564 = vpack.c.bf16 %v466, %v465
          %v1565 = vpack.c.bf16 %v468, %v467
          %v1566 = vpack.c.bf16 %v470, %v469
          %v1567 = vpack.c.bf16 %v472, %v471
          %v1568 = vpack.c.bf16 %v474, %v473
          %v1569 = vpack.c.bf16 %v476, %v475
          %v1570 = vpack.c.bf16 %v478, %v477
          %v1571 = vpack.c.bf16 %v480, %v479
          %1572 = vst [vmem:[#allocation3] sm:$0xff] %v1564
          %1573 = vst [vmem:[#allocation3 + $0x8] sm:$0xff] %v1565
          %1574 = vst [vmem:[#allocation3 + $0x10] sm:$0xff] %v1566
          %1575 = vst [vmem:[#allocation3 + $0x18] sm:$0xff] %v1567
          %1576 = vst [vmem:[#allocation3 + $0x20] sm:$0xff] %v1568
          %1577 = vst [vmem:[#allocation3 + $0x28] sm:$0xff] %v1569
          %1578 = vst [vmem:[#allocation3 + $0x30] sm:$0xff] %v1570
          %1579 = vst [vmem:[#allocation3 + $0x38] sm:$0xff] %v1571
          %1580 = vst [vmem:[#allocation4] sm:$0xff] 0.0
          %1581 = vst [vmem:[#allocation4 + $0x8] sm:$0xff] 0.0
          %1582 = vst [vmem:[#allocation4 + $0x10] sm:$0xff] 0.0
          %1583 = vst [vmem:[#allocation4 + $0x18] sm:$0xff] 0.0
          %1584 = vst [vmem:[#allocation4 + $0x20] sm:$0xff] 0.0
          %1585 = vst [vmem:[#allocation4 + $0x28] sm:$0xff] 0.0
          %1586 = vst [vmem:[#allocation4 + $0x30] sm:$0xff] 0.0
          %1587 = vst [vmem:[#allocation4 + $0x38] sm:$0xff] 0.0
          %1588 = vst [vmem:[#allocation4 + $0x40] sm:$0xff] 0.0
          %1589 = vst [vmem:[#allocation4 + $0x48] sm:$0xff] 0.0
          %1590 = vst [vmem:[#allocation4 + $0x50] sm:$0xff] 0.0
          %1591 = vst [vmem:[#allocation4 + $0x58] sm:$0xff] 0.0
          %1592 = vst [vmem:[#allocation4 + $0x60] sm:$0xff] 0.0
          %1593 = vst [vmem:[#allocation4 + $0x68] sm:$0xff] 0.0
          %1594 = vst [vmem:[#allocation4 + $0x70] sm:$0xff] 0.0
          %1595 = vst [vmem:[#allocation4 + $0x78] sm:$0xff] 0.0
        $region80: #{tpu_custom_call.1} parent=47 // pred_fallthru
          _
        %v1596 = vld [vmem:[#allocation3] sm:$0xff]
        %v1597 = vld [vmem:[#allocation3 + $0x8] sm:$0xff]
        %v1598 = vld [vmem:[#allocation3 + $0x10] sm:$0xff]
        %v1599 = vld [vmem:[#allocation3 + $0x18] sm:$0xff]
        %v1600 = vld [vmem:[#allocation3 + $0x20] sm:$0xff]
        %v1601 = vld [vmem:[#allocation3 + $0x28] sm:$0xff]
        %v1602 = vld [vmem:[#allocation3 + $0x30] sm:$0xff]
        %v1603 = vld [vmem:[#allocation3 + $0x38] sm:$0xff]
        %v1604 = vld [vmem:[%s392] sm:$0xff]
        %v1605 = vld [vmem:[%s392 + $0x8] sm:$0xff]
        %v1606 = vld [vmem:[%s392 + $0x10] sm:$0xff]
        %v1607 = vld [vmem:[%s392 + $0x18] sm:$0xff]
        %v1608 = vld [vmem:[%s392 + $0x20] sm:$0xff]
        %v1609 = vld [vmem:[%s392 + $0x28] sm:$0xff]
        %v1610 = vld [vmem:[%s392 + $0x30] sm:$0xff]
        %v1611 = vld [vmem:[%s392 + $0x38] sm:$0xff]
        %v1612 = vld [vmem:[%s392 + $0x40] sm:$0xff]
        %v1613 = vld [vmem:[%s392 + $0x48] sm:$0xff]
        %v1614 = vld [vmem:[%s392 + $0x50] sm:$0xff]
        %v1615 = vld [vmem:[%s392 + $0x58] sm:$0xff]
        %v1616 = vld [vmem:[%s392 + $0x60] sm:$0xff]
        %v1617 = vld [vmem:[%s392 + $0x68] sm:$0xff]
        %v1618 = vld [vmem:[%s392 + $0x70] sm:$0xff]
        %v1619 = vld [vmem:[%s392 + $0x78] sm:$0xff]
        %v1620 = vld [vmem:[%s410] sm:$0xf]
        %v1621 = vld [vmem:[%s410 + $0x4] sm:$0xf]
        %v1622 = vld [vmem:[%s410 + $0x8] sm:$0xf]
        %v1623 = vld [vmem:[%s410 + $0xc] sm:$0xf]
        %v1624 = vld [vmem:[%s410 + $0x10] sm:$0xf]
        %v1625 = vld [vmem:[%s410 + $0x14] sm:$0xf]
        %v1626 = vld [vmem:[%s410 + $0x18] sm:$0xf]
        %v1627 = vld [vmem:[%s410 + $0x1c] sm:$0xf]
        %v1628 = vld [vmem:[%s410 + $0x20] sm:$0xf]
        %v1629 = vld [vmem:[%s410 + $0x24] sm:$0xf]
        %v1630 = vld [vmem:[%s410 + $0x28] sm:$0xf]
        %v1631 = vld [vmem:[%s410 + $0x2c] sm:$0xf]
        %v1632 = vld [vmem:[%s410 + $0x30] sm:$0xf]
        %v1633 = vld [vmem:[%s410 + $0x34] sm:$0xf]
        %v1634 = vld [vmem:[%s410 + $0x38] sm:$0xf]
        %v1635 = vld [vmem:[%s410 + $0x3c] sm:$0xf]
        %v1636 = vld [vmem:[%s410 + $0x40] sm:$0xf]
        %v1637 = vld [vmem:[%s410 + $0x44] sm:$0xf]
        %v1638 = vld [vmem:[%s410 + $0x48] sm:$0xf]
        %v1639 = vld [vmem:[%s410 + $0x4c] sm:$0xf]
        %v1640 = vld [vmem:[%s410 + $0x50] sm:$0xf]
        %v1641 = vld [vmem:[%s410 + $0x54] sm:$0xf]
        %v1642 = vld [vmem:[%s410 + $0x58] sm:$0xf]
        %v1643 = vld [vmem:[%s410 + $0x5c] sm:$0xf]
        %v1644 = vld [vmem:[%s410 + $0x60] sm:$0xf]
        %v1645 = vld [vmem:[%s410 + $0x64] sm:$0xf]
        %v1646 = vld [vmem:[%s410 + $0x68] sm:$0xf]
        %v1647 = vld [vmem:[%s410 + $0x6c] sm:$0xf]
        %v1648 = vld [vmem:[%s410 + $0x70] sm:$0xf]
        %v1649 = vld [vmem:[%s410 + $0x74] sm:$0xf]
        %v1650 = vld [vmem:[%s410 + $0x78] sm:$0xf]
        %v1651 = vld [vmem:[%s410 + $0x7c] sm:$0xf]
        %v1652 = vld [vmem:[%s401] sm:$0x3]
        %v1654 = vlaneseq
        %v1655 = vshrl.u32 %v1654, 7
        %v1656 = vsub.s32 0, %v1655
        %v1657 = vrot.slane %v1652, %v1656
        %v1658 = vlaneseq
        %v1659 = vshrl.u32 %v1658, 7
        %v1660 = vsub.s32 1, %v1659
        %v1661 = vrot.slane %v1652, %v1660
        %v1680 = vunpack.c.l.b16 %v1604
        %v1681 = vunpack.c.h.b16 %v1604
        %v1682 = vunpack.c.l.b16 %v1605
        %v1683 = vunpack.c.h.b16 %v1605
        %v1684 = vunpack.c.l.b16 %v1606
        %v1685 = vunpack.c.h.b16 %v1606
        %v1686 = vunpack.c.l.b16 %v1607
        %v1687 = vunpack.c.h.b16 %v1607
        %v1688 = vunpack.c.l.b16 %v1608
        %v1689 = vunpack.c.h.b16 %v1608
        %v1690 = vunpack.c.l.b16 %v1609
        %v1691 = vunpack.c.h.b16 %v1609
        %v1692 = vunpack.c.l.b16 %v1610
        %v1693 = vunpack.c.h.b16 %v1610
        %v1694 = vunpack.c.l.b16 %v1611
        %v1695 = vunpack.c.h.b16 %v1611
        %v1696 = vunpack.c.l.b16 %v1612
        %v1697 = vunpack.c.h.b16 %v1612
        %v1698 = vunpack.c.l.b16 %v1613
        %v1699 = vunpack.c.h.b16 %v1613
        %v1700 = vunpack.c.l.b16 %v1614
        %v1701 = vunpack.c.h.b16 %v1614
        %v1702 = vunpack.c.l.b16 %v1615
        %v1703 = vunpack.c.h.b16 %v1615
        %v1704 = vunpack.c.l.b16 %v1616
        %v1705 = vunpack.c.h.b16 %v1616
        %v1706 = vunpack.c.l.b16 %v1617
        %v1707 = vunpack.c.h.b16 %v1617
        %v1708 = vunpack.c.l.b16 %v1618
        %v1709 = vunpack.c.h.b16 %v1618
        %v1710 = vunpack.c.l.b16 %v1619
        %v1711 = vunpack.c.h.b16 %v1619
        %v1712 = vpack.c.b16 %v1682, %v1680
        %v1713 = vpack.c.b16 %v1683, %v1681
        %v1714 = vpack.c.b16 %v1686, %v1684
        %v1715 = vpack.c.b16 %v1687, %v1685
        %v1716 = vpack.c.b16 %v1690, %v1688
        %v1717 = vpack.c.b16 %v1691, %v1689
        %v1718 = vpack.c.b16 %v1694, %v1692
        %v1719 = vpack.c.b16 %v1695, %v1693
        %v1720 = vpack.c.b16 %v1698, %v1696
        %v1721 = vpack.c.b16 %v1699, %v1697
        %v1722 = vpack.c.b16 %v1702, %v1700
        %v1723 = vpack.c.b16 %v1703, %v1701
        %v1724 = vpack.c.b16 %v1706, %v1704
        %v1725 = vpack.c.b16 %v1707, %v1705
        %v1726 = vpack.c.b16 %v1710, %v1708
        %v1727 = vpack.c.b16 %v1711, %v1709
        %1744 = vmatprep.subr.bf16.mxu0 %v1713
        %1745 = vmatpush1.bf16.msra.mxu0 %v1712
        %1746 = vmatprep.subr.bf16.mxu0 %v1715
        %1747 = vmatpush1.bf16.msra.mxu0 %v1714
        %1748 = vmatprep.subr.bf16.mxu0 %v1717
        %1749 = vmatpush1.bf16.msra.mxu0 %v1716
        %1750 = vmatprep.subr.bf16.mxu0 %v1719
        %1751 = vmatpush1.bf16.msra.mxu0 %v1718
        %1752 = vmatprep.subr.bf16.mxu0 %v1721
        %1753 = vmatpush1.bf16.msra.mxu0 %v1720
        %1754 = vmatprep.subr.bf16.mxu0 %v1723
        %1755 = vmatpush1.bf16.msra.mxu0 %v1722
        %1756 = vmatprep.subr.bf16.mxu0 %v1725
        %1757 = vmatpush1.bf16.msra.mxu0 %v1724
        %1758 = vmatprep.subr.bf16.mxu0 %v1727
        %1759 = vmatpush1.bf16.msra.mxu0 %v1726
        %1760 = vmatprep.subr.bf16.mxu0 0
        %1761 = vmatpush1.bf16.msra.mxu0 0
        %1762 = vmatprep.subr.bf16.mxu0 0
        %1763 = vmatpush1.bf16.msra.mxu0 0
        %1764 = vmatprep.subr.bf16.mxu0 0
        %1765 = vmatpush1.bf16.msra.mxu0 0
        %1766 = vmatprep.subr.bf16.mxu0 0
        %1767 = vmatpush1.bf16.msra.mxu0 0
        %1768 = vmatprep.subr.bf16.mxu0 0
        %1769 = vmatpush1.bf16.msra.mxu0 0
        %1770 = vmatprep.subr.bf16.mxu0 0
        %1771 = vmatpush1.bf16.msra.mxu0 0
        %1772 = vmatprep.subr.bf16.mxu0 0
        %1773 = vmatpush1.bf16.msra.mxu0 0
        %1774 = vmatprep.subr.bf16.mxu0 0
        %1775 = vmatpush1.bf16.msra.mxu0 0
        %1776 = vmatprep.mubr.bf16.mxu0 0
        %1777 = vmatmul.mubr.bf16.gmra.mrb[0].mxu0 %v1596
        %v1778 = vpop.f32.mrb[0].mxu0
        %v1779 = vadd.f32 %v1657, %v1778
        %v1780 = vpop.f32.mrb[0].mxu0
        %v1781 = vadd.f32 %v1661, %v1780
        %v1782 = vpop.f32.mrb[0].mxu0
        %v1783 = vadd.f32 %v1657, %v1782
        %v1784 = vpop.f32.mrb[0].mxu0
        %v1785 = vadd.f32 %v1661, %v1784
        %1786 = vmatprep.mubr.bf16.mxu0 0
        %1787 = vmatmul.mubr.bf16.gmra.mrb[0].mxu0 %v1597
        %v1788 = vpop.f32.mrb[0].mxu0
        %v1789 = vadd.f32 %v1657, %v1788
        %v1790 = vpop.f32.mrb[0].mxu0
        %v1791 = vadd.f32 %v1661, %v1790
        %v1792 = vpop.f32.mrb[0].mxu0
        %v1793 = vadd.f32 %v1657, %v1792
        %v1794 = vpop.f32.mrb[0].mxu0
        %v1795 = vadd.f32 %v1661, %v1794
        %1796 = vmatprep.mubr.bf16.mxu0 0
        %1797 = vmatmul.mubr.bf16.gmra.mrb[0].mxu0 %v1598
        %v1798 = vpop.f32.mrb[0].mxu0
        %v1799 = vadd.f32 %v1657, %v1798
        %v1800 = vpop.f32.mrb[0].mxu0
        %v1801 = vadd.f32 %v1661, %v1800
        %v1802 = vpop.f32.mrb[0].mxu0
        %v1803 = vadd.f32 %v1657, %v1802
        %v1804 = vpop.f32.mrb[0].mxu0
        %v1805 = vadd.f32 %v1661, %v1804
        %1806 = vmatprep.mubr.bf16.mxu0 0
        %1807 = vmatmul.mubr.bf16.gmra.mrb[0].mxu0 %v1599
        %v1808 = vpop.f32.mrb[0].mxu0
        %v1809 = vadd.f32 %v1657, %v1808
        %v1810 = vpop.f32.mrb[0].mxu0
        %v1811 = vadd.f32 %v1661, %v1810
        %v1812 = vpop.f32.mrb[0].mxu0
        %v1813 = vadd.f32 %v1657, %v1812
        %v1814 = vpop.f32.mrb[0].mxu0
        %v1815 = vadd.f32 %v1661, %v1814
        %1816 = vmatprep.mubr.bf16.mxu0 0
        %1817 = vmatmul.mubr.bf16.gmra.mrb[0].mxu0 %v1600
        %v1818 = vpop.f32.mrb[0].mxu0
        %v1819 = vadd.f32 %v1657, %v1818
        %v1820 = vpop.f32.mrb[0].mxu0
        %v1821 = vadd.f32 %v1661, %v1820
        %v1822 = vpop.f32.mrb[0].mxu0
        %v1823 = vadd.f32 %v1657, %v1822
        %v1824 = vpop.f32.mrb[0].mxu0
        %v1825 = vadd.f32 %v1661, %v1824
        %1826 = vmatprep.mubr.bf16.mxu0 0
        %1827 = vmatmul.mubr.bf16.gmra.mrb[0].mxu0 %v1601
        %v1828 = vpop.f32.mrb[0].mxu0
        %v1829 = vadd.f32 %v1657, %v1828
        %v1830 = vpop.f32.mrb[0].mxu0
        %v1831 = vadd.f32 %v1661, %v1830
        %v1832 = vpop.f32.mrb[0].mxu0
        %v1833 = vadd.f32 %v1657, %v1832
        %v1834 = vpop.f32.mrb[0].mxu0
        %v1835 = vadd.f32 %v1661, %v1834
        %1836 = vmatprep.mubr.bf16.mxu0 0
        %1837 = vmatmul.mubr.bf16.gmra.mrb[0].mxu0 %v1602
        %v1838 = vpop.f32.mrb[0].mxu0
        %v1839 = vadd.f32 %v1657, %v1838
        %v1840 = vpop.f32.mrb[0].mxu0
        %v1841 = vadd.f32 %v1661, %v1840
        %v1842 = vpop.f32.mrb[0].mxu0
        %v1843 = vadd.f32 %v1657, %v1842
        %v1844 = vpop.f32.mrb[0].mxu0
        %v1845 = vadd.f32 %v1661, %v1844
        %1846 = vmatprep.mubr.bf16.mxu0 0
        %1847 = vmatmul.mubr.bf16.gmra.mrb[0].mxu0 %v1603
        %v1848 = vpop.f32.mrb[0].mxu0
        %v1849 = vadd.f32 %v1657, %v1848
        %v1850 = vpop.f32.mrb[0].mxu0
        %v1851 = vadd.f32 %v1661, %v1850
        %v1852 = vpop.f32.mrb[0].mxu0
        %v1853 = vadd.f32 %v1657, %v1852
        %v1854 = vpop.f32.mrb[0].mxu0
        %v1855 = vadd.f32 %v1661, %v1854
        %1856 = vdwg.mxu0
        %v1857 = vmax.f32 %v1779, 0.0
        %v1858 = vmax.f32 %v1781, 0.0
        %v1859 = vmax.f32 %v1783, 0.0
        %v1860 = vmax.f32 %v1785, 0.0
        %v1861 = vmax.f32 %v1789, 0.0
        %v1862 = vmax.f32 %v1791, 0.0
        %v1863 = vmax.f32 %v1793, 0.0
        %v1864 = vmax.f32 %v1795, 0.0
        %v1865 = vmax.f32 %v1799, 0.0
        %v1866 = vmax.f32 %v1801, 0.0
        %v1867 = vmax.f32 %v1803, 0.0
        %v1868 = vmax.f32 %v1805, 0.0
        %v1869 = vmax.f32 %v1809, 0.0
        %v1870 = vmax.f32 %v1811, 0.0
        %v1871 = vmax.f32 %v1813, 0.0
        %v1872 = vmax.f32 %v1815, 0.0
        %v1873 = vmax.f32 %v1819, 0.0
        %v1874 = vmax.f32 %v1821, 0.0
        %v1875 = vmax.f32 %v1823, 0.0
        %v1876 = vmax.f32 %v1825, 0.0
        %v1877 = vmax.f32 %v1829, 0.0
        %v1878 = vmax.f32 %v1831, 0.0
        %v1879 = vmax.f32 %v1833, 0.0
        %v1880 = vmax.f32 %v1835, 0.0
        %v1881 = vmax.f32 %v1839, 0.0
        %v1882 = vmax.f32 %v1841, 0.0
        %v1883 = vmax.f32 %v1843, 0.0
        %v1884 = vmax.f32 %v1845, 0.0
        %v1885 = vmax.f32 %v1849, 0.0
        %v1886 = vmax.f32 %v1851, 0.0
        %v1887 = vmax.f32 %v1853, 0.0
        %v1888 = vmax.f32 %v1855, 0.0
        %v1889 = vpack.c.bf16 %v1859, %v1857
        %v1890 = vpack.c.bf16 %v1860, %v1858
        %v1891 = vpack.c.bf16 %v1863, %v1861
        %v1892 = vpack.c.bf16 %v1864, %v1862
        %v1893 = vpack.c.bf16 %v1867, %v1865
        %v1894 = vpack.c.bf16 %v1868, %v1866
        %v1895 = vpack.c.bf16 %v1871, %v1869
        %v1896 = vpack.c.bf16 %v1872, %v1870
        %v1897 = vpack.c.bf16 %v1875, %v1873
        %v1898 = vpack.c.bf16 %v1876, %v1874
        %v1899 = vpack.c.bf16 %v1879, %v1877
        %v1900 = vpack.c.bf16 %v1880, %v1878
        %v1901 = vpack.c.bf16 %v1883, %v1881
        %v1902 = vpack.c.bf16 %v1884, %v1882
        %v1903 = vpack.c.bf16 %v1887, %v1885
        %v1904 = vpack.c.bf16 %v1888, %v1886
        %v1905 = vld [vmem:[%s418] sm:$0x1]
        %v1907 = vlaneseq
        %v1908 = vshrl.u32 %v1907, 7
        %v1909 = vsub.s32 0, %v1908
        %v1910 = vrot.slane %v1905, %v1909
        %v1944 = vunpack.c.l.b16 %v1620
        %v1945 = vunpack.c.l.b16 %v1621
        %v1946 = vunpack.c.l.b16 %v1622
        %v1947 = vunpack.c.l.b16 %v1623
        %v1948 = vunpack.c.l.b16 %v1624
        %v1949 = vunpack.c.l.b16 %v1625
        %v1950 = vunpack.c.l.b16 %v1626
        %v1951 = vunpack.c.l.b16 %v1627
        %v1952 = vunpack.c.l.b16 %v1628
        %v1953 = vunpack.c.l.b16 %v1629
        %v1954 = vunpack.c.l.b16 %v1630
        %v1955 = vunpack.c.l.b16 %v1631
        %v1956 = vunpack.c.l.b16 %v1632
        %v1957 = vunpack.c.l.b16 %v1633
        %v1958 = vunpack.c.l.b16 %v1634
        %v1959 = vunpack.c.l.b16 %v1635
        %v1960 = vunpack.c.l.b16 %v1636
        %v1961 = vunpack.c.l.b16 %v1637
        %v1962 = vunpack.c.l.b16 %v1638
        %v1963 = vunpack.c.l.b16 %v1639
        %v1964 = vunpack.c.l.b16 %v1640
        %v1965 = vunpack.c.l.b16 %v1641
        %v1966 = vunpack.c.l.b16 %v1642
        %v1967 = vunpack.c.l.b16 %v1643
        %v1968 = vunpack.c.l.b16 %v1644
        %v1969 = vunpack.c.l.b16 %v1645
        %v1970 = vunpack.c.l.b16 %v1646
        %v1971 = vunpack.c.l.b16 %v1647
        %v1972 = vunpack.c.l.b16 %v1648
        %v1973 = vunpack.c.l.b16 %v1649
        %v1974 = vunpack.c.l.b16 %v1650
        %v1975 = vunpack.c.l.b16 %v1651
        %v1976 = vpack.c.b16 %v1945, %v1944
        %v1977 = vpack.c.b16 %v1947, %v1946
        %v1978 = vpack.c.b16 %v1949, %v1948
        %v1979 = vpack.c.b16 %v1951, %v1950
        %v1980 = vpack.c.b16 %v1953, %v1952
        %v1981 = vpack.c.b16 %v1955, %v1954
        %v1982 = vpack.c.b16 %v1957, %v1956
        %v1983 = vpack.c.b16 %v1959, %v1958
        %v1984 = vpack.c.b16 %v1961, %v1960
        %v1985 = vpack.c.b16 %v1963, %v1962
        %v1986 = vpack.c.b16 %v1965, %v1964
        %v1987 = vpack.c.b16 %v1967, %v1966
        %v1988 = vpack.c.b16 %v1969, %v1968
        %v1989 = vpack.c.b16 %v1971, %v1970
        %v1990 = vpack.c.b16 %v1973, %v1972
        %v1991 = vpack.c.b16 %v1975, %v1974
        %2008 = vmatprep.subr.bf16.mxu0 0
        %2009 = vmatpush1.bf16.msra.mxu0 %v1976
        %2010 = vmatprep.subr.bf16.mxu0 0
        %2011 = vmatpush1.bf16.msra.mxu0 %v1977
        %2012 = vmatprep.subr.bf16.mxu0 0
        %2013 = vmatpush1.bf16.msra.mxu0 %v1978
        %2014 = vmatprep.subr.bf16.mxu0 0
        %2015 = vmatpush1.bf16.msra.mxu0 %v1979
        %2016 = vmatprep.subr.bf16.mxu0 0
        %2017 = vmatpush1.bf16.msra.mxu0 %v1980
        %2018 = vmatprep.subr.bf16.mxu0 0
        %2019 = vmatpush1.bf16.msra.mxu0 %v1981
        %2020 = vmatprep.subr.bf16.mxu0 0
        %2021 = vmatpush1.bf16.msra.mxu0 %v1982
        %2022 = vmatprep.subr.bf16.mxu0 0
        %2023 = vmatpush1.bf16.msra.mxu0 %v1983
        %2024 = vmatprep.subr.bf16.mxu0 0
        %2025 = vmatpush1.bf16.msra.mxu0 %v1984
        %2026 = vmatprep.subr.bf16.mxu0 0
        %2027 = vmatpush1.bf16.msra.mxu0 %v1985
        %2028 = vmatprep.subr.bf16.mxu0 0
        %2029 = vmatpush1.bf16.msra.mxu0 %v1986
        %2030 = vmatprep.subr.bf16.mxu0 0
        %2031 = vmatpush1.bf16.msra.mxu0 %v1987
        %2032 = vmatprep.subr.bf16.mxu0 0
        %2033 = vmatpush1.bf16.msra.mxu0 %v1988
        %2034 = vmatprep.subr.bf16.mxu0 0
        %2035 = vmatpush1.bf16.msra.mxu0 %v1989
        %2036 = vmatprep.subr.bf16.mxu0 0
        %2037 = vmatpush1.bf16.msra.mxu0 %v1990
        %2038 = vmatprep.subr.bf16.mxu0 0
        %2039 = vmatpush1.bf16.msra.mxu0 %v1991
        %2040 = vmatprep.mubr.bf16.mxu0 %v1890
        %2041 = vmatmul.mubr.bf16.gmra.mrb[0].mxu0 %v1889
        %v2042 = vpop.f32.mrb[0].mxu0
        %v2043 = vadd.f32 %v1910, %v2042
        %v2044 = vpop.f32.mrb[0].mxu0
        %v2045 = vpop.f32.mrb[0].mxu0
        %v2046 = vadd.f32 %v1910, %v2045
        %v2047 = vpop.f32.mrb[0].mxu0
        %2048 = vmatprep.mubr.bf16.mxu0 %v1892
        %2049 = vmatmul.mubr.bf16.gmra.mrb[0].mxu0 %v1891
        %v2050 = vpop.f32.mrb[0].mxu0
        %v2051 = vadd.f32 %v1910, %v2050
        %v2052 = vpop.f32.mrb[0].mxu0
        %v2053 = vpop.f32.mrb[0].mxu0
        %v2054 = vadd.f32 %v1910, %v2053
        %v2055 = vpop.f32.mrb[0].mxu0
        %2056 = vmatprep.mubr.bf16.mxu0 %v1894
        %2057 = vmatmul.mubr.bf16.gmra.mrb[0].mxu0 %v1893
        %v2058 = vpop.f32.mrb[0].mxu0
        %v2059 = vadd.f32 %v1910, %v2058
        %v2060 = vpop.f32.mrb[0].mxu0
        %v2061 = vpop.f32.mrb[0].mxu0
        %v2062 = vadd.f32 %v1910, %v2061
        %v2063 = vpop.f32.mrb[0].mxu0
        %2064 = vmatprep.mubr.bf16.mxu0 %v1896
        %2065 = vmatmul.mubr.bf16.gmra.mrb[0].mxu0 %v1895
        %v2066 = vpop.f32.mrb[0].mxu0
        %v2067 = vadd.f32 %v1910, %v2066
        %v2068 = vpop.f32.mrb[0].mxu0
        %v2069 = vpop.f32.mrb[0].mxu0
        %v2070 = vadd.f32 %v1910, %v2069
        %v2071 = vpop.f32.mrb[0].mxu0
        %2072 = vmatprep.mubr.bf16.mxu0 %v1898
        %2073 = vmatmul.mubr.bf16.gmra.mrb[0].mxu0 %v1897
        %v2074 = vpop.f32.mrb[0].mxu0
        %v2075 = vadd.f32 %v1910, %v2074
        %v2076 = vpop.f32.mrb[0].mxu0
        %v2077 = vpop.f32.mrb[0].mxu0
        %v2078 = vadd.f32 %v1910, %v2077
        %v2079 = vpop.f32.mrb[0].mxu0
        %2080 = vmatprep.mubr.bf16.mxu0 %v1900
        %2081 = vmatmul.mubr.bf16.gmra.mrb[0].mxu0 %v1899
        %v2082 = vpop.f32.mrb[0].mxu0
        %v2083 = vadd.f32 %v1910, %v2082
        %v2084 = vpop.f32.mrb[0].mxu0
        %v2085 = vpop.f32.mrb[0].mxu0
        %v2086 = vadd.f32 %v1910, %v2085
        %v2087 = vpop.f32.mrb[0].mxu0
        %2088 = vmatprep.mubr.bf16.mxu0 %v1902
        %2089 = vmatmul.mubr.bf16.gmra.mrb[0].mxu0 %v1901
        %v2090 = vpop.f32.mrb[0].mxu0
        %v2091 = vadd.f32 %v1910, %v2090
        %v2092 = vpop.f32.mrb[0].mxu0
        %v2093 = vpop.f32.mrb[0].mxu0
        %v2094 = vadd.f32 %v1910, %v2093
        %v2095 = vpop.f32.mrb[0].mxu0
        %2096 = vmatprep.mubr.bf16.mxu0 %v1904
        %2097 = vmatmul.mubr.bf16.gmra.mrb[0].mxu0 %v1903
        %v2098 = vpop.f32.mrb[0].mxu0
        %v2099 = vadd.f32 %v1910, %v2098
        %v2100 = vpop.f32.mrb[0].mxu0
        %v2101 = vpop.f32.mrb[0].mxu0
        %v2102 = vadd.f32 %v1910, %v2101
        %v2103 = vpop.f32.mrb[0].mxu0
        %2104 = vdwg.mxu0
        %v2105 = vlaneseq
        %v2106 = vand.u32 %v2105, 127
        %v2107 = vstv %s32
        %vm2108 = vcmp.eq.s32.totalorder %v2106, %v2107
        %v2109 = vld [vmem:[#allocation2] sm:$0xff]
        %v2110 = vld [vmem:[#allocation2 + $0x8] sm:$0xff]
        %v2111 = vld [vmem:[#allocation2 + $0x10] sm:$0xff]
        %v2112 = vld [vmem:[#allocation2 + $0x18] sm:$0xff]
        %v2113 = vld [vmem:[#allocation2 + $0x20] sm:$0xff]
        %v2114 = vld [vmem:[#allocation2 + $0x28] sm:$0xff]
        %v2115 = vld [vmem:[#allocation2 + $0x30] sm:$0xff]
        %v2116 = vld [vmem:[#allocation2 + $0x38] sm:$0xff]
        %v2117 = vld [vmem:[#allocation2 + $0x40] sm:$0xff]
        %v2118 = vld [vmem:[#allocation2 + $0x48] sm:$0xff]
        %v2119 = vld [vmem:[#allocation2 + $0x50] sm:$0xff]
        %v2120 = vld [vmem:[#allocation2 + $0x58] sm:$0xff]
        %v2121 = vld [vmem:[#allocation2 + $0x60] sm:$0xff]
        %v2122 = vld [vmem:[#allocation2 + $0x68] sm:$0xff]
        %v2123 = vld [vmem:[#allocation2 + $0x70] sm:$0xff]
        %v2124 = vld [vmem:[#allocation2 + $0x78] sm:$0xff]
        %v2125 = vsel %vm2108, %v2109, 0.0
        %v2126 = vsel %vm2108, %v2110, 0.0
        %v2127 = vsel %vm2108, %v2111, 0.0
        %v2128 = vsel %vm2108, %v2112, 0.0
        %v2129 = vsel %vm2108, %v2113, 0.0
        %v2130 = vsel %vm2108, %v2114, 0.0
        %v2131 = vsel %vm2108, %v2115, 0.0
        %v2132 = vsel %vm2108, %v2116, 0.0
        %v2133 = vsel %vm2108, %v2117, 0.0
        %v2134 = vsel %vm2108, %v2118, 0.0
        %v2135 = vsel %vm2108, %v2119, 0.0
        %v2136 = vsel %vm2108, %v2120, 0.0
        %v2137 = vsel %vm2108, %v2121, 0.0
        %v2138 = vsel %vm2108, %v2122, 0.0
        %v2139 = vsel %vm2108, %v2123, 0.0
        %v2140 = vsel %vm2108, %v2124, 0.0
        %vm2141 = vcmask 31744
        %v2142 = vsel %vm2141, %v2125, 0.0
        %2143 = vadd.xlane.f32.xlu0 %v2142
        %v2144 = vpop.xlane.xlu0 %2143
        %v2145 = vsel %vm2141, %v2126, 0.0
        %2146 = vadd.xlane.f32.xlu0 %v2145
        %v2147 = vpop.xlane.xlu0 %2146
        %v2148 = vsel %vm2141, %v2127, 0.0
        %2149 = vadd.xlane.f32.xlu0 %v2148
        %v2150 = vpop.xlane.xlu0 %2149
        %v2151 = vsel %vm2141, %v2128, 0.0
        %2152 = vadd.xlane.f32.xlu0 %v2151
        %v2153 = vpop.xlane.xlu0 %2152
        %v2154 = vsel %vm2141, %v2129, 0.0
        %2155 = vadd.xlane.f32.xlu0 %v2154
        %v2156 = vpop.xlane.xlu0 %2155
        %v2157 = vsel %vm2141, %v2130, 0.0
        %2158 = vadd.xlane.f32.xlu0 %v2157
        %v2159 = vpop.xlane.xlu0 %2158
        %v2160 = vsel %vm2141, %v2131, 0.0
        %2161 = vadd.xlane.f32.xlu0 %v2160
        %v2162 = vpop.xlane.xlu0 %2161
        %v2163 = vsel %vm2141, %v2132, 0.0
        %2164 = vadd.xlane.f32.xlu0 %v2163
        %v2165 = vpop.xlane.xlu0 %2164
        %v2166 = vsel %vm2141, %v2133, 0.0
        %2167 = vadd.xlane.f32.xlu0 %v2166
        %v2168 = vpop.xlane.xlu0 %2167
        %v2169 = vsel %vm2141, %v2134, 0.0
        %2170 = vadd.xlane.f32.xlu0 %v2169
        %v2171 = vpop.xlane.xlu0 %2170
        %v2172 = vsel %vm2141, %v2135, 0.0
        %2173 = vadd.xlane.f32.xlu0 %v2172
        %v2174 = vpop.xlane.xlu0 %2173
        %v2175 = vsel %vm2141, %v2136, 0.0
        %2176 = vadd.xlane.f32.xlu0 %v2175
        %v2177 = vpop.xlane.xlu0 %2176
        %v2178 = vsel %vm2141, %v2137, 0.0
        %2179 = vadd.xlane.f32.xlu0 %v2178
        %v2180 = vpop.xlane.xlu0 %2179
        %v2181 = vsel %vm2141, %v2138, 0.0
        %2182 = vadd.xlane.f32.xlu0 %v2181
        %v2183 = vpop.xlane.xlu0 %2182
        %v2184 = vsel %vm2141, %v2139, 0.0
        %2185 = vadd.xlane.f32.xlu0 %v2184
        %v2186 = vpop.xlane.xlu0 %2185
        %v2187 = vsel %vm2141, %v2140, 0.0
        %2188 = vadd.xlane.f32.xlu0 %v2187
        %v2189 = vpop.xlane.xlu0 %2188
        %v2190 = vld [vmem:[#allocation4] sm:$0xff]
        %v2191 = vld [vmem:[#allocation4 + $0x8] sm:$0xff]
        %v2192 = vld [vmem:[#allocation4 + $0x10] sm:$0xff]
        %v2193 = vld [vmem:[#allocation4 + $0x18] sm:$0xff]
        %v2194 = vld [vmem:[#allocation4 + $0x20] sm:$0xff]
        %v2195 = vld [vmem:[#allocation4 + $0x28] sm:$0xff]
        %v2196 = vld [vmem:[#allocation4 + $0x30] sm:$0xff]
        %v2197 = vld [vmem:[#allocation4 + $0x38] sm:$0xff]
        %v2198 = vld [vmem:[#allocation4 + $0x40] sm:$0xff]
        %v2199 = vld [vmem:[#allocation4 + $0x48] sm:$0xff]
        %v2200 = vld [vmem:[#allocation4 + $0x50] sm:$0xff]
        %v2201 = vld [vmem:[#allocation4 + $0x58] sm:$0xff]
        %v2202 = vld [vmem:[#allocation4 + $0x60] sm:$0xff]
        %v2203 = vld [vmem:[#allocation4 + $0x68] sm:$0xff]
        %v2204 = vld [vmem:[#allocation4 + $0x70] sm:$0xff]
        %v2205 = vld [vmem:[#allocation4 + $0x78] sm:$0xff]
        %v2206 = vmul.f32 %v2144, %v2043
        %v2207 = vmul.f32 %v2147, %v2046
        %v2208 = vmul.f32 %v2150, %v2051
        %v2209 = vmul.f32 %v2153, %v2054
        %v2210 = vmul.f32 %v2156, %v2059
        %v2211 = vmul.f32 %v2159, %v2062
        %v2212 = vmul.f32 %v2162, %v2067
        %v2213 = vmul.f32 %v2165, %v2070
        %v2214 = vmul.f32 %v2168, %v2075
        %v2215 = vmul.f32 %v2171, %v2078
        %v2216 = vmul.f32 %v2174, %v2083
        %v2217 = vmul.f32 %v2177, %v2086
        %v2218 = vmul.f32 %v2180, %v2091
        %v2219 = vmul.f32 %v2183, %v2094
        %v2220 = vmul.f32 %v2186, %v2099
        %v2221 = vmul.f32 %v2189, %v2102
        %v2222 = vadd.f32 %v2190, %v2206
        %v2223 = vadd.f32 %v2191, %v2207
        %v2224 = vadd.f32 %v2192, %v2208
        %v2225 = vadd.f32 %v2193, %v2209
        %v2226 = vadd.f32 %v2194, %v2210
        %v2227 = vadd.f32 %v2195, %v2211
        %v2228 = vadd.f32 %v2196, %v2212
        %v2229 = vadd.f32 %v2197, %v2213
        %v2230 = vadd.f32 %v2198, %v2214
        %v2231 = vadd.f32 %v2199, %v2215
        %v2232 = vadd.f32 %v2200, %v2216
        %v2233 = vadd.f32 %v2201, %v2217
        %v2234 = vadd.f32 %v2202, %v2218
        %v2235 = vadd.f32 %v2203, %v2219
        %v2236 = vadd.f32 %v2204, %v2220
        %v2237 = vadd.f32 %v2205, %v2221
        %2238 = vst [vmem:[#allocation4] sm:$0xff] %v2222
        %2239 = vst [vmem:[#allocation4 + $0x8] sm:$0xff] %v2223
        %2240 = vst [vmem:[#allocation4 + $0x10] sm:$0xff] %v2224
        %2241 = vst [vmem:[#allocation4 + $0x18] sm:$0xff] %v2225
        %2242 = vst [vmem:[#allocation4 + $0x20] sm:$0xff] %v2226
        %2243 = vst [vmem:[#allocation4 + $0x28] sm:$0xff] %v2227
        %2244 = vst [vmem:[#allocation4 + $0x30] sm:$0xff] %v2228
        %2245 = vst [vmem:[#allocation4 + $0x38] sm:$0xff] %v2229
        %2246 = vst [vmem:[#allocation4 + $0x40] sm:$0xff] %v2230
        %2247 = vst [vmem:[#allocation4 + $0x48] sm:$0xff] %v2231
        %2248 = vst [vmem:[#allocation4 + $0x50] sm:$0xff] %v2232
        %2249 = vst [vmem:[#allocation4 + $0x58] sm:$0xff] %v2233
        %2250 = vst [vmem:[#allocation4 + $0x60] sm:$0xff] %v2234
        %2251 = vst [vmem:[#allocation4 + $0x68] sm:$0xff] %v2235
        %2252 = vst [vmem:[#allocation4 + $0x70] sm:$0xff] %v2236
        %2253 = vst [vmem:[#allocation4 + $0x78] sm:$0xff] %v2237
        %p2254 = scmp.eq.s32.totalorder %s32, 3
        // Predicated region
        $region81: #{tpu_custom_call.1} parent=47 // pred_check
          %p2255 = pneg %p2254
        $region82: #{tpu_custom_call.1} parent=47 // pred_check_branch
          %2257 = sbr.rel (%p2255) target = $region84
        $region83: #{tpu_custom_call.1} parent=47 // pred_region
          %v2258 = vld [vmem:[#allocation4] sm:$0xff]
          %v2259 = vld [vmem:[#allocation4 + $0x8] sm:$0xff]
          %v2260 = vld [vmem:[#allocation4 + $0x10] sm:$0xff]
          %v2261 = vld [vmem:[#allocation4 + $0x18] sm:$0xff]
          %v2262 = vld [vmem:[#allocation4 + $0x20] sm:$0xff]
          %v2263 = vld [vmem:[#allocation4 + $0x28] sm:$0xff]
          %v2264 = vld [vmem:[#allocation4 + $0x30] sm:$0xff]
          %v2265 = vld [vmem:[#allocation4 + $0x38] sm:$0xff]
          %v2266 = vld [vmem:[#allocation4 + $0x40] sm:$0xff]
          %v2267 = vld [vmem:[#allocation4 + $0x48] sm:$0xff]
          %v2268 = vld [vmem:[#allocation4 + $0x50] sm:$0xff]
          %v2269 = vld [vmem:[#allocation4 + $0x58] sm:$0xff]
          %v2270 = vld [vmem:[#allocation4 + $0x60] sm:$0xff]
          %v2271 = vld [vmem:[#allocation4 + $0x68] sm:$0xff]
          %v2272 = vld [vmem:[#allocation4 + $0x70] sm:$0xff]
          %v2273 = vld [vmem:[#allocation4 + $0x78] sm:$0xff]
          %2274 = vst [vmem:[#allocation17] sm:$0xff] %v2258
          %2275 = vst [vmem:[#allocation17 + $0x8] sm:$0xff] %v2259
          %2276 = vst [vmem:[#allocation17 + $0x10] sm:$0xff] %v2260
          %2277 = vst [vmem:[#allocation17 + $0x18] sm:$0xff] %v2261
          %2278 = vst [vmem:[#allocation17 + $0x20] sm:$0xff] %v2262
          %2279 = vst [vmem:[#allocation17 + $0x28] sm:$0xff] %v2263
          %2280 = vst [vmem:[#allocation17 + $0x30] sm:$0xff] %v2264
          %2281 = vst [vmem:[#allocation17 + $0x38] sm:$0xff] %v2265
          %2282 = vst [vmem:[#allocation17 + $0x40] sm:$0xff] %v2266
          %2283 = vst [vmem:[#allocation17 + $0x48] sm:$0xff] %v2267
          %2284 = vst [vmem:[#allocation17 + $0x50] sm:$0xff] %v2268
          %2285 = vst [vmem:[#allocation17 + $0x58] sm:$0xff] %v2269
          %2286 = vst [vmem:[#allocation17 + $0x60] sm:$0xff] %v2270
          %2287 = vst [vmem:[#allocation17 + $0x68] sm:$0xff] %v2271
          %2288 = vst [vmem:[#allocation17 + $0x70] sm:$0xff] %v2272
          %2289 = vst [vmem:[#allocation17 + $0x78] sm:$0xff] %v2273
        $region84: #{tpu_custom_call.1} parent=47 // pred_fallthru
          _
        // Predicated region
        $region85: #{tpu_custom_call.1} parent=47 // pred_check
          %p2290 = pneg %p229
        $region86: #{tpu_custom_call.1} parent=47 // pred_check_branch
          %2292 = sbr.rel (%p2290) target = $region88
        $region87: #{tpu_custom_call.1} parent=47 // pred_region
          %s2293 = smul.u32 16, %s31
          %s2295 = ssub.s32 2048, 2048
          %2296 = vsyncadd [#allocation7], %s2295
          %s2297 = smul.addr %s2293, 128
          %s2298 = scalar_lea.hbm %s7, %s2297
          %s2299 = sshll.u32 [#allocation17], 4
          %s2300 = int_to_ptr.vmem [resolvable:$true] %s2299
          %2305 = dma.vmem_to_hbm [thread:$0]  %s2300, 2048, %s2298, [#allocation7], 128, 128, 8
        $region88: #{tpu_custom_call.1} parent=47 // pred_fallthru
          _
        // Predicated region
        $region89: #{tpu_custom_call.1} parent=47 // pred_check
          %p2306 = pneg %p229
        $region90: #{tpu_custom_call.1} parent=47 // pred_check_branch
          %2308 = sbr.rel (%p2306) target = $region92
        $region91: #{tpu_custom_call.1} parent=47 // pred_region
          %2309 = dma.done [#allocation7], 2048
        $region92: #{tpu_custom_call.1} parent=47 // pred_fallthru
          _
      $region48: #{tpu_custom_call.1} parent=5 // pred_fallthru
        _
      %p2310 = scmp.le.s32.totalorder 2, %s22
      // Predicated region
      $region93: #{tpu_custom_call.1} parent=5 // pred_check
        %p2311 = pneg %p2310
      $region94: #{tpu_custom_call.1} parent=5 // pred_check_branch
        %2313 = sbr.rel (%p2311) target = $region96
      $region95: #{tpu_custom_call.1} parent=5 // pred_region
        %s2314 = ssub.s32 %s22, 2
      $region96: #{tpu_custom_call.1} parent=5 // pred_fallthru
        _
    $region6: #{tpu_custom_call.1} parent=1 // loop_footer
      %s26 = sadd.s32 1, %s22
    $region7: #{tpu_custom_call.1} parent=1 // loop_footer_branch
      %21 = sbr.rel target = $region3
    $region8: #{tpu_custom_call.1} parent=1 // loop_exit
      _
    %2315 = vsyncpa [#allocation6], 1
    %s2316 = scalar_lea.sflag [#allocation6], 1
    %2317 = vsyncpa %s2316, 1
    %2318 = vsyncpa [#allocation9], 1
    %2319 = vsyncpa [#allocation12], 1
    %s2320 = scalar_lea.sflag [#allocation12], 1
    %2321 = vsyncpa %s2320, 1
    %2322 = vsyncpa [#allocation15], 1
    %s2323 = scalar_lea.sflag [#allocation15], 1
    %2324 = vsyncpa %s2323, 1
    %2325 = vsyncpa [#allocation7], 1
    %s2326 = scalar_lea.sflag [#allocation7], 1
    %2327 = vsyncpa %s2326, 1

</llo_original>
